<compile_context>
chip_gen: v7x
topology: tpu7x:2x2x1
jax: 0.10.0
libtpu: 0.0.40
codegen_flags: <defaults>
</compile_context>

<pallas_src>
import functools

import jax
import jax.numpy as jnp
from jax.experimental import pallas as pl
from jax.experimental.pallas import tpu as pltpu

HIDDEN = 512        # matches the PyTorch module
O_PAD_MULT = 8      # pad final-layer width to a sublane multiple (full-dim block)
TM_CAP = 512        # row tile; sweep 512 -> 1024 for production-sized N


def _round_up(n, m):
    return (n + m - 1) // m * m


def _use_bf16_activations():
    """bf16 VPU/EUP path exists on v6e and newer; keep f32 on older chips."""
    try:
        kind = jax.devices()[0].device_kind.lower()
    except Exception:  # pragma: no cover - e.g. no devices during AOT tracing
        return False
    return not any(g in kind for g in ("v2", "v3", "v4", "v5"))


def _mlp3_fused_kernel(x_ref, w1_ref, b1_ref, w2_ref, b2_ref, w3_ref, b3_ref,
                       o_ref, *, bf16_act):
    """One head (grid axis 0) of tanh(Lin) -> tanh(Lin) -> Lin.

    Matmuls run in bf16 on the MXU with f32 accumulation.  On v6e/v7x the
    bias-add + tanh run in bf16 (bf16_act=True); on v5e they stay in f32.
    Either way the hidden activations feed the next matmul as bf16.
    """
    x = x_ref[...].astype(jnp.bfloat16)

    a1 = jnp.dot(x, w1_ref[...], preferred_element_type=jnp.float32)
    if bf16_act:
        h1 = jnp.tanh(a1.astype(jnp.bfloat16) + b1_ref[...].astype(jnp.bfloat16))
    else:
        h1 = jnp.tanh(a1 + b1_ref[...]).astype(jnp.bfloat16)

    a2 = jnp.dot(h1, w2_ref[...], preferred_element_type=jnp.float32)
    if bf16_act:
        h2 = jnp.tanh(a2.astype(jnp.bfloat16) + b2_ref[...].astype(jnp.bfloat16))
    else:
        h2 = jnp.tanh(a2 + b2_ref[...]).astype(jnp.bfloat16)

    out = jnp.dot(h2, w3_ref[...], preferred_element_type=jnp.float32) + b3_ref[...]
    o_ref[...] = out.astype(o_ref.dtype)


def _choose_tm(n_rows):
    if n_rows >= TM_CAP:
        return TM_CAP
    # Tiny N: single tile, rounded to a multiple of 16 so the bf16 LHS packs
    # whole sublane pairs (no relayout before the MXU feed).
    return _round_up(max(n_rows, 16), 16)


def mlp3_fused_pallas(x2d, w1, b1, w2, b2, w3, b3):
    """x2d: (N, F) f32. w*: (2, in, out) bf16 head-stacked. b*: (2, 1, out) f32.

    Returns (2, N, O_pad) f32: slab h is head h's (sublane-padded) output.
    """
    N, F = x2d.shape
    H = w1.shape[-1]
    O_pad = w3.shape[-1]

    tm = _choose_tm(N)
    n_pad = _round_up(N, tm)
    if n_pad != N:
        x2d = jnp.pad(x2d, ((0, n_pad - N), (0, 0)))

    # Head axis first (outermost) so each head's weights are DMA'd once
    # (constant index map across the inner row-tile axis) and stay VMEM
    # resident for that head.  On v7x the 2-wide parallel head axis is the
    # natural split across the two TensorCores.
    grid = (2, n_pad // tm)

    kernel = functools.partial(_mlp3_fused_kernel,
                               bf16_act=_use_bf16_activations())

    out = pl.pallas_call(
        kernel,
        out_shape=jax.ShapeDtypeStruct((2, n_pad, O_pad), jnp.float32),
        grid_spec=pltpu.PrefetchScalarGridSpec(
            num_scalar_prefetch=0,
            grid=grid,
            in_specs=[
                pl.BlockSpec((tm, F), lambda h, i: (i, 0)),              # activations
                # Constant-index weight/bias blocks (fetched once per head).
                pl.BlockSpec((None, F, H), lambda h, i: (h, 0, 0)),      # W1 (in,out) bf16
                pl.BlockSpec((None, 1, H), lambda h, i: (h, 0, 0)),      # b1 f32
                pl.BlockSpec((None, H, H), lambda h, i: (h, 0, 0)),      # W2 bf16
                pl.BlockSpec((None, 1, H), lambda h, i: (h, 0, 0)),      # b2 f32
                pl.BlockSpec((None, H, O_pad), lambda h, i: (h, 0, 0)),  # W3 bf16 (padded)
                pl.BlockSpec((None, 1, O_pad), lambda h, i: (h, 0, 0)),  # b3 f32 (padded)
            ],
            out_specs=pl.BlockSpec((None, tm, O_pad), lambda h, i: (h, i, 0)),
        ),
        compiler_params=pltpu.CompilerParams(
            # Head axis has 2 programs -> shards across v7x's two TensorCores;
            # row-tile axis is also independent.  No-op on single-TC chips.
            dimension_semantics=("parallel", "parallel"),
            # ~4 MiB actual footprint at tm=512 (bf16 weights ~0.7 MiB/head
            # double-buffered + x/h/out tiles); 32 MiB fits every generation
            # including v7x's 64 MiB-per-TC physical.
            vmem_limit_bytes=32 * 1024 * 1024,
        ),
    )(x2d, w1, b1, w2, b2, w3, b3)

    return out[:, :N, :]


def orthogonal_init(key, out_dim, in_dim, gain):
    """Deterministic orthogonal init matching torch.nn.init.orthogonal_ semantics."""
    a = jax.random.normal(key, (out_dim, in_dim), dtype=jnp.float32)
    if out_dim < in_dim:
        a = a.T
    q, r = jnp.linalg.qr(a)
    q = q * jnp.sign(jnp.diagonal(r))[None, :]
    if out_dim < in_dim:
        q = q.T
    return gain * q  # shape (out_dim, in_dim), like torch Linear.weight


def make_params(key, input_size, output_size):
    """Reference (torch-layout, f32) parameters for both heads."""
    tanh_gain = 5.0 / 3.0  # nn.init.calculate_gain('tanh')
    keys = jax.random.split(key, 6)
    return {
        "actor": {
            "w1": orthogonal_init(keys[0], HIDDEN, input_size, tanh_gain),
            "b1": jnp.zeros((HIDDEN,), jnp.float32),
            "w2": orthogonal_init(keys[1], HIDDEN, HIDDEN, tanh_gain),
            "b2": jnp.zeros((HIDDEN,), jnp.float32),
            "w3": orthogonal_init(keys[2], output_size, HIDDEN, 0.01),
            "b3": jnp.zeros((output_size,), jnp.float32),
        },
        "critic": {
            "w1": orthogonal_init(keys[3], HIDDEN, input_size, tanh_gain),
            "b1": jnp.zeros((HIDDEN,), jnp.float32),
            "w2": orthogonal_init(keys[4], HIDDEN, HIDDEN, tanh_gain),
            "b2": jnp.zeros((HIDDEN,), jnp.float32),
            "w3": orthogonal_init(keys[5], 1, HIDDEN, 1.0),
            "b3": jnp.zeros((1,), jnp.float32),
        },
    }


def prepare_kernel_params(params, output_size):
    """One-time packing: (in,out) layout, bf16 weights, head-stacked, W3/b3 padded
    to a multiple of 8 output lanes (full-dim block -> masked but cheap stores)."""
    o_pad = _round_up(max(output_size, 1), O_PAD_MULT)

    def pack_head(p):
        w3t = p["w3"].T                                  # (HIDDEN, O_head)
        o_head = w3t.shape[1]
        w3p = jnp.zeros((HIDDEN, o_pad), jnp.float32).at[:, :o_head].set(w3t)
        b3p = jnp.zeros((1, o_pad), jnp.float32).at[:, :o_head].set(p["b3"][None, :])
        return (
            p["w1"].T.astype(jnp.bfloat16),
            p["b1"][None, :].astype(jnp.float32),
            p["w2"].T.astype(jnp.bfloat16),
            p["b2"][None, :].astype(jnp.float32),
            w3p.astype(jnp.bfloat16),
            b3p,
        )

    actor = pack_head(params["actor"])
    critic = pack_head(params["critic"])
    # -> w1 (2,F,H) bf16, b1 (2,1,H) f32, w2 (2,H,H) bf16, b2 (2,1,H) f32,
    #    w3 (2,H,O_pad) bf16, b3 (2,1,O_pad) f32
    return tuple(jnp.stack([a, c], axis=0) for a, c in zip(actor, critic))


@functools.partial(jax.jit, static_argnames=("output_size",))
def forward(kernel_params, inputs, masks, states, *, output_size):
    """TimeDistributedMultiLayerPerceptron.forward(inputs, masks, states).

    inputs: (T, B, input_size). masks is unused (as in the PyTorch module).
    Returns (actor (T, B, output_size), critic (T, B, 1), states).
    """
    del masks  # unused by the PyTorch module's forward
    T, B, F = inputs.shape
    x2d = inputs.reshape(T * B, F)
    heads = mlp3_fused_pallas(x2d, *kernel_params)   # (2, T*B, O_pad)
    actor = heads[0, :, :output_size].reshape(T, B, output_size)
    critic = heads[1, :, :1].reshape(T, B, 1)
    return actor, critic, states


def _reference(params, inputs):
    T, B, F = inputs.shape
    x = inputs.reshape(T * B, F)

    def head(x, p):
        h1 = jnp.tanh(x @ p["w1"].T + p["b1"])
        h2 = jnp.tanh(h1 @ p["w2"].T + p["b2"])
        return h2 @ p["w3"].T + p["b3"]

    a = head(x, params["actor"]).reshape(T, B, -1)
    c = head(x, params["critic"]).reshape(T, B, 1)
    return a, c


def _max_rel_err(got, ref):
    """Max abs error relative to the reference's own scale (non-vacuous for the
    0.01-gain actor head, unlike a fixed absolute tolerance)."""
    scale = jnp.maximum(jnp.max(jnp.abs(ref)), 1e-6)
    return float(jnp.max(jnp.abs(got - ref)) / scale)


if __name__ == "__main__":
    key = jax.random.PRNGKey(0)
    k_param, k_x, k_s = jax.random.split(key, 3)

    T, B = 8, 2            # seq, batch (TimeDistributed leading dims)
    input_size = 64
    output_size = 6

    params = make_params(k_param, input_size, output_size)
    kernel_params = prepare_kernel_params(params, output_size)

    inputs = jax.random.normal(k_x, (T, B, input_size), dtype=jnp.float32)
    masks = jnp.ones((T, B, 1), dtype=jnp.float32)        # unused by forward
    states = jax.random.normal(k_s, (B, 16), dtype=jnp.float32)

    actor_out, critic_out, states_out = forward(
        kernel_params, inputs, masks, states, output_size=output_size)
    jax.block_until_ready((actor_out, critic_out, states_out))

    # Correctness check against plain-JAX f32 reference of the PyTorch semantics.
    a_ref, c_ref = _reference(params, inputs)
    assert actor_out.shape == (T, B, output_size)
    assert critic_out.shape == (T, B, 1)
    # bf16 matmuls (f32 accumulation, optional bf16 tanh) -> ~1% relative error;
    # 5% scale-relative bound is tight enough to catch real regressions.
    assert _max_rel_err(actor_out, a_ref) < 5e-2
    assert _max_rel_err(critic_out, c_ref) < 5e-2
    assert jnp.array_equal(states_out, states)

    print("KERNEL_OK")
</pallas_src>

<mosaic_0001>
module attributes {stable_mosaic.version = 11 : i64} {
  func.func @_mlp3_fused_kernel(%arg0: i32, %arg1: i32, %arg2: memref<16x64xf32, #tpu.memory_space<vmem>>, %arg3: memref<1x64x512xbf16, #tpu.memory_space<vmem>>, %arg4: memref<1x1x512xf32, #tpu.memory_space<vmem>>, %arg5: memref<1x512x512xbf16, #tpu.memory_space<vmem>>, %arg6: memref<1x1x512xf32, #tpu.memory_space<vmem>>, %arg7: memref<1x512x8xbf16, #tpu.memory_space<vmem>>, %arg8: memref<1x1x8xf32, #tpu.memory_space<vmem>>, %arg9: memref<1x16x8xf32, #tpu.memory_space<vmem>>) attributes {dimension_semantics = [#tpu.dimension_semantics<parallel>, #tpu.dimension_semantics<parallel>], iteration_bounds = array<i64: 2, 1>, scalar_prefetch = 0 : i64, scratch_operands = 0 : i64, tpu.core_type = #tpu.core_type<tc>, window_params = [{transform_indices = @transform_0, window_bounds = array<i64: 16, 64>}, {transform_indices = @transform_1, window_bounds = array<i64: 1, 64, 512>}, {transform_indices = @transform_2, window_bounds = array<i64: 1, 1, 512>}, {transform_indices = @transform_3, window_bounds = array<i64: 1, 512, 512>}, {transform_indices = @transform_4, window_bounds = array<i64: 1, 1, 512>}, {transform_indices = @transform_5, window_bounds = array<i64: 1, 512, 8>}, {transform_indices = @transform_6, window_bounds = array<i64: 1, 1, 8>}, {transform_indices = @transform_7, window_bounds = array<i64: 1, 16, 8>}]} {
    %c0 = arith.constant 0 : index
    %c0_0 = arith.constant 0 : index
    %0 = vector.load %arg2[%c0, %c0_0] : memref<16x64xf32, #tpu.memory_space<vmem>>, vector<16x64xf32>
    %1 = arith.truncf %0 : vector<16x64xf32> to vector<16x64xbf16>
    %c0_1 = arith.constant 0 : index
    %c0_2 = arith.constant 0 : index
    %c0_3 = arith.constant 0 : index
    %2 = vector.load %arg3[%c0_1, %c0_2, %c0_3] : memref<1x64x512xbf16, #tpu.memory_space<vmem>>, vector<1x64x512xbf16>
    %3 = vector.shape_cast %2 : vector<1x64x512xbf16> to vector<64x512xbf16>
    %cst = arith.constant dense<0.000000e+00> : vector<16x512xf32>
    %4 = tpu.matmul %1, %3, %cst {dimension_numbers = #tpu.dot_dimension_numbers<[1], [0], [0], [1], [0, 0, 1, 1], [], []>} : vector<16x64xbf16>, vector<64x512xbf16>, vector<16x512xf32> -> vector<16x512xf32>
    %5 = arith.truncf %4 : vector<16x512xf32> to vector<16x512xbf16>
    %c0_4 = arith.constant 0 : index
    %c0_5 = arith.constant 0 : index
    %c0_6 = arith.constant 0 : index
    %6 = vector.load %arg4[%c0_4, %c0_5, %c0_6] : memref<1x1x512xf32, #tpu.memory_space<vmem>>, vector<1x1x512xf32>
    %7 = vector.shape_cast %6 : vector<1x1x512xf32> to vector<1x512xf32>
    %8 = arith.truncf %7 : vector<1x512xf32> to vector<1x512xbf16>
    %9 = vector.broadcast %8 : vector<1x512xbf16> to vector<16x512xbf16>
    %10 = arith.addf %5, %9 : vector<16x512xbf16>
    %11 = math.tanh %10 : vector<16x512xbf16>
    %c0_7 = arith.constant 0 : index
    %c0_8 = arith.constant 0 : index
    %c0_9 = arith.constant 0 : index
    %12 = vector.load %arg5[%c0_7, %c0_8, %c0_9] : memref<1x512x512xbf16, #tpu.memory_space<vmem>>, vector<1x512x512xbf16>
    %13 = vector.shape_cast %12 : vector<1x512x512xbf16> to vector<512x512xbf16>
    %cst_10 = arith.constant dense<0.000000e+00> : vector<16x512xf32>
    %14 = tpu.matmul %11, %13, %cst_10 {dimension_numbers = #tpu.dot_dimension_numbers<[1], [0], [0], [1], [0, 0, 1, 1], [], []>} : vector<16x512xbf16>, vector<512x512xbf16>, vector<16x512xf32> -> vector<16x512xf32>
    %15 = arith.truncf %14 : vector<16x512xf32> to vector<16x512xbf16>
    %c0_11 = arith.constant 0 : index
    %c0_12 = arith.constant 0 : index
    %c0_13 = arith.constant 0 : index
    %16 = vector.load %arg6[%c0_11, %c0_12, %c0_13] : memref<1x1x512xf32, #tpu.memory_space<vmem>>, vector<1x1x512xf32>
    %17 = vector.shape_cast %16 : vector<1x1x512xf32> to vector<1x512xf32>
    %18 = arith.truncf %17 : vector<1x512xf32> to vector<1x512xbf16>
    %19 = vector.broadcast %18 : vector<1x512xbf16> to vector<16x512xbf16>
    %20 = arith.addf %15, %19 : vector<16x512xbf16>
    %21 = math.tanh %20 : vector<16x512xbf16>
    %c0_14 = arith.constant 0 : index
    %c0_15 = arith.constant 0 : index
    %c0_16 = arith.constant 0 : index
    %22 = vector.load %arg7[%c0_14, %c0_15, %c0_16] : memref<1x512x8xbf16, #tpu.memory_space<vmem>>, vector<1x512x8xbf16>
    %23 = vector.shape_cast %22 : vector<1x512x8xbf16> to vector<512x8xbf16>
    %cst_17 = arith.constant dense<0.000000e+00> : vector<16x8xf32>
    %24 = tpu.matmul %21, %23, %cst_17 {dimension_numbers = #tpu.dot_dimension_numbers<[1], [0], [0], [1], [0, 0, 1, 1], [], []>} : vector<16x512xbf16>, vector<512x8xbf16>, vector<16x8xf32> -> vector<16x8xf32>
    %c0_18 = arith.constant 0 : index
    %c0_19 = arith.constant 0 : index
    %c0_20 = arith.constant 0 : index
    %25 = vector.load %arg8[%c0_18, %c0_19, %c0_20] : memref<1x1x8xf32, #tpu.memory_space<vmem>>, vector<1x1x8xf32>
    %26 = vector.shape_cast %25 : vector<1x1x8xf32> to vector<1x8xf32>
    %27 = vector.broadcast %26 : vector<1x8xf32> to vector<16x8xf32>
    %28 = arith.addf %24, %27 : vector<16x8xf32>
    %c0_21 = arith.constant 0 : index
    %c0_22 = arith.constant 0 : index
    %c0_23 = arith.constant 0 : index
    %29 = vector.load %arg9[%c0_21, %c0_22, %c0_23] : memref<1x16x8xf32, #tpu.memory_space<vmem>>, vector<1x16x8xf32>
    %30 = vector.shape_cast %29 : vector<1x16x8xf32> to vector<16x8xf32>
    %31 = vector.shape_cast %28 : vector<16x8xf32> to vector<1x16x8xf32>
    tpu.vector_store %arg9[%c0_21, %c0_22, %c0_23], %31 {strides = array<i32>} : memref<1x16x8xf32, #tpu.memory_space<vmem>>, vector<1x16x8xf32>,
    return
  }
  func.func @transform_0(%arg0: i32, %arg1: i32) -> (i32, i32) {
    %c0_i32 = arith.constant 0 : i32
    %c0_i32_0 = arith.constant 0 : i32
    return %arg1, %c0_i32 : i32, i32
  }
  func.func @transform_1(%arg0: i32, %arg1: i32) -> (i32, i32, i32) {
    %c0_i32 = arith.constant 0 : i32
    %c0_i32_0 = arith.constant 0 : i32
    %c0_i32_1 = arith.constant 0 : i32
    return %arg0, %c0_i32, %c0_i32_0 : i32, i32, i32
  }
  func.func @transform_2(%arg0: i32, %arg1: i32) -> (i32, i32, i32) {
    %c0_i32 = arith.constant 0 : i32
    %c0_i32_0 = arith.constant 0 : i32
    %c0_i32_1 = arith.constant 0 : i32
    return %arg0, %c0_i32, %c0_i32_0 : i32, i32, i32
  }
  func.func @transform_3(%arg0: i32, %arg1: i32) -> (i32, i32, i32) {
    %c0_i32 = arith.constant 0 : i32
    %c0_i32_0 = arith.constant 0 : i32
    %c0_i32_1 = arith.constant 0 : i32
    return %arg0, %c0_i32, %c0_i32_0 : i32, i32, i32
  }
  func.func @transform_4(%arg0: i32, %arg1: i32) -> (i32, i32, i32) {
    %c0_i32 = arith.constant 0 : i32
    %c0_i32_0 = arith.constant 0 : i32
    %c0_i32_1 = arith.constant 0 : i32
    return %arg0, %c0_i32, %c0_i32_0 : i32, i32, i32
  }
  func.func @transform_5(%arg0: i32, %arg1: i32) -> (i32, i32, i32) {
    %c0_i32 = arith.constant 0 : i32
    %c0_i32_0 = arith.constant 0 : i32
    %c0_i32_1 = arith.constant 0 : i32
    return %arg0, %c0_i32, %c0_i32_0 : i32, i32, i32
  }
  func.func @transform_6(%arg0: i32, %arg1: i32) -> (i32, i32, i32) {
    %c0_i32 = arith.constant 0 : i32
    %c0_i32_0 = arith.constant 0 : i32
    %c0_i32_1 = arith.constant 0 : i32
    return %arg0, %c0_i32, %c0_i32_0 : i32, i32, i32
  }
  func.func @transform_7(%arg0: i32, %arg1: i32) -> (i32, i32, i32) {
    %c0_i32 = arith.constant 0 : i32
    %c0_i32_0 = arith.constant 0 : i32
    return %arg0, %arg1, %c0_i32 : i32, i32, i32
  }
}

</mosaic_0001>

<llo_original>
// kernel: squeeze.3
$region0: #{squeeze.3}
  %s0 = inlined_call_operand.vmem [shape: f32[16], index: 0, kind: input, shape index: {}]
  %s1 = inlined_call_operand.vmem [shape: f32[8,2,1], index: 1, kind: output, shape index: {}]
  $region1: #{squeeze.3} parent=0
    #allocation0 [shape = 'u8[4096]{0}', space=vmem, size = 0x1000, scoped, tag = 'scoped mem for input reshape']
    %s3 = sshllo.u32 0, 1
    %v4 = vld [vmem:[%s0] sm:%s3]
    %5 = vst [vmem:[#allocation0] sm:%s3] %v4
    %v6 = vld [vmem:[#allocation0] sm:$0x1]
    %vm7 = vcmask 15360
    %8 = vst.msk [vmem:[%s1] sm:$0x1] %vm7, %v6
    %v9 = vld [vmem:[#allocation0] sm:$0x1]
    %10 = vrot.lane.b32.xlu0 %v9, 126
    %v11 = vpop.permute.xlu0 %10
    %vm12 = vcmask 15360
    %s13 = scalar_lea.vmem %s1, 1
    %14 = vst.msk [vmem:[%s13] sm:$0x1] %vm12, %v11
    %v15 = vld [vmem:[#allocation0] sm:$0x1]
    %16 = vrot.lane.b32.xlu0 %v15, 124
    %v17 = vpop.permute.xlu0 %16
    %vm18 = vcmask 15360
    %s19 = scalar_lea.vmem %s1, 2
    %20 = vst.msk [vmem:[%s19] sm:$0x1] %vm18, %v17
    %v21 = vld [vmem:[#allocation0] sm:$0x1]
    %22 = vrot.lane.b32.xlu0 %v21, 122
    %v23 = vpop.permute.xlu0 %22
    %vm24 = vcmask 15360
    %s25 = scalar_lea.vmem %s1, 3
    %26 = vst.msk [vmem:[%s25] sm:$0x1] %vm24, %v23
    %v27 = vld [vmem:[#allocation0] sm:$0x1]
    %28 = vrot.lane.b32.xlu0 %v27, 120
    %v29 = vpop.permute.xlu0 %28
    %vm30 = vcmask 15360
    %s31 = scalar_lea.vmem %s1, 4
    %32 = vst.msk [vmem:[%s31] sm:$0x1] %vm30, %v29
    %v33 = vld [vmem:[#allocation0] sm:$0x1]
    %34 = vrot.lane.b32.xlu0 %v33, 118
    %v35 = vpop.permute.xlu0 %34
    %vm36 = vcmask 15360
    %s37 = scalar_lea.vmem %s1, 5
    %38 = vst.msk [vmem:[%s37] sm:$0x1] %vm36, %v35
    %v39 = vld [vmem:[#allocation0] sm:$0x1]
    %40 = vrot.lane.b32.xlu0 %v39, 116
    %v41 = vpop.permute.xlu0 %40
    %vm42 = vcmask 15360
    %s43 = scalar_lea.vmem %s1, 6
    %44 = vst.msk [vmem:[%s43] sm:$0x1] %vm42, %v41
    %v45 = vld [vmem:[#allocation0] sm:$0x1]
    %46 = vrot.lane.b32.xlu0 %v45, 114
    %v47 = vpop.permute.xlu0 %46
    %vm48 = vcmask 15360
    %s49 = scalar_lea.vmem %s1, 7
    %50 = vst.msk [vmem:[%s49] sm:$0x1] %vm48, %v47

// kernel: forward.1
$region0: #{forward.1}
  #allocation0 [shape = 'u32[]', space=smem, size = 0x4, offset = 0x4, fixed_abs, tag = 'smem constant byte address 0x4 - core index']
  #allocation1 [shape = 'u32[144,128]{1,0:T(1,128)}', space=vmem, size = 0x12000, scoped, tag = 'internal scratch']
  %s0 = inlined_call_operand.vmem [shape: f32[16,64], index: 0, kind: input, shape index: {}]
  %s1 = inlined_call_operand.vmem [shape: bf16[2,64,512], index: 1, kind: input, shape index: {}]
  %s2 = inlined_call_operand.vmem [shape: f32[2,1,512], index: 2, kind: input, shape index: {}]
  %s3 = inlined_call_operand.hbm [shape: bf16[2,512,512], index: 3, kind: input, shape index: {}]
  %s4 = inlined_call_operand.vmem [shape: f32[2,1,512], index: 4, kind: input, shape index: {}]
  %s5 = inlined_call_operand.vmem [shape: bf16[2,512,8], index: 5, kind: input, shape index: {}]
  %s6 = inlined_call_operand.vmem [shape: f32[2,1,8], index: 6, kind: input, shape index: {}]
  %s7 = inlined_call_operand.vmem [shape: f32[2,16,8], index: 7, kind: output, shape index: {}]
  %s8 = sld [smem:[#allocation0]]
  $region65: #{forward.1} parent=0
    _
  %s10 = ssub.s32 1, %s8
  %s11 = scalar_select 0, %s10, %s8
  $region1: #{forward.1} parent=0
    #allocation2 [shape = 'u8[1048576]{0}', space=vmem, size = 0x100000, scoped, tag = 'input window, operand 3']
    #allocation3 [shape = 's32[2]{0}', space=sflag, size = 0x8, scoped, tag = 'scoped memory for forward.1']
    %12 = vsyncpa [#allocation3], 0
    %s13 = scalar_lea.sflag [#allocation3], 1
    %14 = vsyncpa %s13, 0
    loop: start=0, step=1, limit=4
    $region2: #{forward.1} parent=1 // loop_pre_header
      _
    $region3: #{forward.1} parent=1 // loop_header
      %s16 = sphi 0, %s20
      %p17 = scmp.ge.s32.totalorder %s16, 4
      %s23 = sphi 0, %s35
      %s24 = sphi 0, %s31
      %s25 = sphi 0, %s23
      %s26 = sphi 0, %s24
      %s27 = sphi 0, %s25
      %s28 = sphi 0, %s26
      %s38 = sphi 0, %s40
      %s41 = sphi 0, %s38
      %s42 = sphi 0, %s41
      %s58 = sphi 0, %s42
      %s64 = sphi 0, %s66
      %s67 = sphi 0, %s64
      %s68 = sphi 0, %s67
      %s84 = sphi 0, %s68
      %s90 = sphi 0, %s92
      %s93 = sphi 0, %s90
      %s94 = sphi 0, %s93
      %s110 = sphi 0, %s94
      %s116 = sphi 0, %s118
      %s119 = sphi 0, %s116
      %s120 = sphi 0, %s119
      %s136 = sphi 0, %s120
      %s142 = sphi 0, %s144
      %s145 = sphi 0, %s142
      %s146 = sphi 0, %s145
      %s162 = sphi 0, %s146
      %s168 = sphi 0, %s170
      %s171 = sphi 0, %s168
      %s172 = sphi 0, %s171
      %s188 = sphi 0, %s172
      %s194 = sphi 0, %s196
      %s197 = sphi 0, %s194
      %s198 = sphi 0, %s197
      %s214 = sphi 0, %s198
      %s222 = sphi 0, %s224
      %s225 = sphi 0, %s222
      %s226 = sphi 0, %s225
      %s242 = sphi 0, %s226
    $region4: #{forward.1} parent=1 // loop_header_branch
      %19 = sbr.rel (%p17) target = $region8
    $region5: #{forward.1} parent=1 // loop_body
      %s21 = ssub.s32 %s16, 1
      %s22 = ssub.s32 %s16, 2
      %s29 = sadd.s32 1, %s24
      %p30 = scmp.ge.s32.totalorder %s29, 1
      %s31 = scalar_select %p30, 0, %s29
      %s32 = sadd.s32 1, %s23
      %s33 = scalar_select %p30, %s32, %s23
      %p34 = scmp.ge.s32.totalorder %s33, 2
      %s35 = scalar_select %p34, 0, %s33
      %s36 = ssub.s32 %s24, %s31
      %p37 = scmp.eq.s32.totalorder %s36, 0
      %s39 = sadd.s32 %s38, 1
      %s40 = scalar_select %p37, %s38, %s39
      %p43 = pneg %p37
      %p44 = scmp.eq.s32.totalorder %s16, 1
      %p45 = por %p43, %p44
      %p46 = scmp.ne.s32.totalorder %s38, %s41
      %p47 = scmp.eq.s32.totalorder %s16, 0
      %p48 = por %p46, %p47
      %p49 = scmp.ne.s32.totalorder %s38, %s41
      %p50 = scmp.eq.s32.totalorder %s21, 1
      %p51 = por %p49, %p50
      %p52 = scmp.ne.s32.totalorder %s41, %s42
      %p53 = scmp.eq.s32.totalorder %s21, 0
      %p54 = por %p52, %p53
      %p55 = scmp.ne.s32.totalorder %s41, %s42
      %p56 = scmp.eq.s32.totalorder %s22, 1
      %p57 = por %p55, %p56
      %p59 = scmp.ne.s32.totalorder %s42, %s58
      %p60 = scmp.eq.s32.totalorder %s22, 0
      %p61 = por %p59, %p60
      %s62 = ssub.s32 %s23, %s35
      %p63 = scmp.eq.s32.totalorder %s62, 0
      %s65 = sadd.s32 %s64, 1
      %s66 = scalar_select %p63, %s64, %s65
      %p69 = pneg %p63
      %p70 = scmp.eq.s32.totalorder %s16, 1
      %p71 = por %p69, %p70
      %p72 = scmp.ne.s32.totalorder %s64, %s67
      %p73 = scmp.eq.s32.totalorder %s16, 0
      %p74 = por %p72, %p73
      %p75 = scmp.ne.s32.totalorder %s64, %s67
      %p76 = scmp.eq.s32.totalorder %s21, 1
      %p77 = por %p75, %p76
      %p78 = scmp.ne.s32.totalorder %s67, %s68
      %p79 = scmp.eq.s32.totalorder %s21, 0
      %p80 = por %p78, %p79
      %p81 = scmp.ne.s32.totalorder %s67, %s68
      %p82 = scmp.eq.s32.totalorder %s22, 1
      %p83 = por %p81, %p82
      %p85 = scmp.ne.s32.totalorder %s68, %s84
      %p86 = scmp.eq.s32.totalorder %s22, 0
      %p87 = por %p85, %p86
      %s88 = ssub.s32 %s23, %s35
      %p89 = scmp.eq.s32.totalorder %s88, 0
      %s91 = sadd.s32 %s90, 1
      %s92 = scalar_select %p89, %s90, %s91
      %p95 = pneg %p89
      %p96 = scmp.eq.s32.totalorder %s16, 1
      %p97 = por %p95, %p96
      %p98 = scmp.ne.s32.totalorder %s90, %s93
      %p99 = scmp.eq.s32.totalorder %s16, 0
      %p100 = por %p98, %p99
      %p101 = scmp.ne.s32.totalorder %s90, %s93
      %p102 = scmp.eq.s32.totalorder %s21, 1
      %p103 = por %p101, %p102
      %p104 = scmp.ne.s32.totalorder %s93, %s94
      %p105 = scmp.eq.s32.totalorder %s21, 0
      %p106 = por %p104, %p105
      %p107 = scmp.ne.s32.totalorder %s93, %s94
      %p108 = scmp.eq.s32.totalorder %s22, 1
      %p109 = por %p107, %p108
      %p111 = scmp.ne.s32.totalorder %s94, %s110
      %p112 = scmp.eq.s32.totalorder %s22, 0
      %p113 = por %p111, %p112
      %s114 = ssub.s32 %s23, %s35
      %p115 = scmp.eq.s32.totalorder %s114, 0
      %s117 = sadd.s32 %s116, 1
      %s118 = scalar_select %p115, %s116, %s117
      %p121 = pneg %p115
      %p122 = scmp.eq.s32.totalorder %s16, 1
      %p123 = por %p121, %p122
      %p124 = scmp.ne.s32.totalorder %s116, %s119
      %p125 = scmp.eq.s32.totalorder %s16, 0
      %p126 = por %p124, %p125
      %p127 = scmp.ne.s32.totalorder %s116, %s119
      %p128 = scmp.eq.s32.totalorder %s21, 1
      %p129 = por %p127, %p128
      %p130 = scmp.ne.s32.totalorder %s119, %s120
      %p131 = scmp.eq.s32.totalorder %s21, 0
      %p132 = por %p130, %p131
      %p133 = scmp.ne.s32.totalorder %s119, %s120
      %p134 = scmp.eq.s32.totalorder %s22, 1
      %p135 = por %p133, %p134
      %p137 = scmp.ne.s32.totalorder %s120, %s136
      %p138 = scmp.eq.s32.totalorder %s22, 0
      %p139 = por %p137, %p138
      %s140 = ssub.s32 %s23, %s35
      %p141 = scmp.eq.s32.totalorder %s140, 0
      %s143 = sadd.s32 %s142, 1
      %s144 = scalar_select %p141, %s142, %s143
      %p147 = pneg %p141
      %p148 = scmp.eq.s32.totalorder %s16, 1
      %p149 = por %p147, %p148
      %p150 = scmp.ne.s32.totalorder %s142, %s145
      %p151 = scmp.eq.s32.totalorder %s16, 0
      %p152 = por %p150, %p151
      %p153 = scmp.ne.s32.totalorder %s142, %s145
      %p154 = scmp.eq.s32.totalorder %s21, 1
      %p155 = por %p153, %p154
      %p156 = scmp.ne.s32.totalorder %s145, %s146
      %p157 = scmp.eq.s32.totalorder %s21, 0
      %p158 = por %p156, %p157
      %p159 = scmp.ne.s32.totalorder %s145, %s146
      %p160 = scmp.eq.s32.totalorder %s22, 1
      %p161 = por %p159, %p160
      %p163 = scmp.ne.s32.totalorder %s146, %s162
      %p164 = scmp.eq.s32.totalorder %s22, 0
      %p165 = por %p163, %p164
      %s166 = ssub.s32 %s23, %s35
      %p167 = scmp.eq.s32.totalorder %s166, 0
      %s169 = sadd.s32 %s168, 1
      %s170 = scalar_select %p167, %s168, %s169
      %p173 = pneg %p167
      %p174 = scmp.eq.s32.totalorder %s16, 1
      %p175 = por %p173, %p174
      %p176 = scmp.ne.s32.totalorder %s168, %s171
      %p177 = scmp.eq.s32.totalorder %s16, 0
      %p178 = por %p176, %p177
      %p179 = scmp.ne.s32.totalorder %s168, %s171
      %p180 = scmp.eq.s32.totalorder %s21, 1
      %p181 = por %p179, %p180
      %p182 = scmp.ne.s32.totalorder %s171, %s172
      %p183 = scmp.eq.s32.totalorder %s21, 0
      %p184 = por %p182, %p183
      %p185 = scmp.ne.s32.totalorder %s171, %s172
      %p186 = scmp.eq.s32.totalorder %s22, 1
      %p187 = por %p185, %p186
      %p189 = scmp.ne.s32.totalorder %s172, %s188
      %p190 = scmp.eq.s32.totalorder %s22, 0
      %p191 = por %p189, %p190
      %s192 = ssub.s32 %s23, %s35
      %p193 = scmp.eq.s32.totalorder %s192, 0
      %s195 = sadd.s32 %s194, 1
      %s196 = scalar_select %p193, %s194, %s195
      %p199 = pneg %p193
      %p200 = scmp.eq.s32.totalorder %s16, 1
      %p201 = por %p199, %p200
      %p202 = scmp.ne.s32.totalorder %s194, %s197
      %p203 = scmp.eq.s32.totalorder %s16, 0
      %p204 = por %p202, %p203
      %p205 = scmp.ne.s32.totalorder %s194, %s197
      %p206 = scmp.eq.s32.totalorder %s21, 1
      %p207 = por %p205, %p206
      %p208 = scmp.ne.s32.totalorder %s197, %s198
      %p209 = scmp.eq.s32.totalorder %s21, 0
      %p210 = por %p208, %p209
      %p211 = scmp.ne.s32.totalorder %s197, %s198
      %p212 = scmp.eq.s32.totalorder %s22, 1
      %p213 = por %p211, %p212
      %p215 = scmp.ne.s32.totalorder %s198, %s214
      %p216 = scmp.eq.s32.totalorder %s22, 0
      %p217 = por %p215, %p216
      %s218 = ssub.s32 %s23, %s35
      %s219 = ssub.s32 %s24, %s31
      %s220 = sor.u32 %s218, %s219
      %p221 = scmp.eq.s32.totalorder %s220, 0
      %s223 = sadd.s32 %s222, 1
      %s224 = scalar_select %p221, %s222, %s223
      %p227 = pneg %p221
      %p228 = scmp.eq.s32.totalorder %s16, 1
      %p229 = por %p227, %p228
      %p230 = scmp.ne.s32.totalorder %s222, %s225
      %p231 = scmp.eq.s32.totalorder %s16, 0
      %p232 = por %p230, %p231
      %p233 = scmp.ne.s32.totalorder %s222, %s225
      %p234 = scmp.eq.s32.totalorder %s21, 1
      %p235 = por %p233, %p234
      %p236 = scmp.ne.s32.totalorder %s225, %s226
      %p237 = scmp.eq.s32.totalorder %s21, 0
      %p238 = por %p236, %p237
      %p239 = scmp.ne.s32.totalorder %s225, %s226
      %p240 = scmp.eq.s32.totalorder %s22, 1
      %p241 = por %p239, %p240
      %p243 = scmp.ne.s32.totalorder %s226, %s242
      %p244 = scmp.eq.s32.totalorder %s22, 0
      %p245 = por %p243, %p244
      %p246 = scmp.le.s32.totalorder 1, %s16
      %p247 = scmp.lt.s32.totalorder %s16, 3
      %p248 = pnand %p246, %p247
      %p249 = pneg %p248
      // Predicated region
      $region9: #{forward.1} parent=5 // pred_check
        _
      $region10: #{forward.1} parent=5 // pred_check_branch
        %251 = sbr.rel (%p248) target = $region12
      $region11: #{forward.1} parent=5 // pred_region
        %s252 = ssub.s32 %s16, 1
        // Predicated region
        $region13: #{forward.1} parent=11 // pred_check
          %p253 = pneg %p54
        $region14: #{forward.1} parent=11 // pred_check_branch
          %255 = sbr.rel (%p253) target = $region16
        $region15: #{forward.1} parent=11 // pred_region
          %s256 = smul.u32 2, %s26
          %p257 = scmp.lt.s32.totalorder %s256, 1
          %s258 = scalar_select %p257, %s256, 1
          %s259 = smul.addr %s258, 8
          %s260 = scalar_lea.vmem %s0, %s259
          %s261 = smul.u32 2, %s26
        $region16: #{forward.1} parent=11 // pred_fallthru
          _
      $region12: #{forward.1} parent=5 // pred_fallthru
        _
      %p262 = scmp.lt.s32.totalorder %s16, 2
      // Predicated region
      $region17: #{forward.1} parent=5 // pred_check
        %p263 = pneg %p262
      $region18: #{forward.1} parent=5 // pred_check_branch
        %265 = sbr.rel (%p263) target = $region20
      $region19: #{forward.1} parent=5 // pred_region
        // Predicated region
        $region21: #{forward.1} parent=19 // pred_check
          %p266 = pneg %p74
        $region22: #{forward.1} parent=19 // pred_check_branch
          %268 = sbr.rel (%p266) target = $region24
        $region23: #{forward.1} parent=19 // pred_region
          %p269 = scmp.lt.s32.totalorder %s23, 1
          %s270 = scalar_select %p269, %s23, 1
          %s271 = smul.addr %s270, 32
          %s272 = smul.addr %s271, 4
          %s273 = scalar_lea.vmem %s1, %s272
        $region24: #{forward.1} parent=19 // pred_fallthru
          _
        // Predicated region
        $region25: #{forward.1} parent=19 // pred_check
          %p274 = pneg %p100
        $region26: #{forward.1} parent=19 // pred_check_branch
          %276 = sbr.rel (%p274) target = $region28
        $region27: #{forward.1} parent=19 // pred_region
          %p277 = scmp.lt.s32.totalorder %s23, 1
          %s278 = scalar_select %p277, %s23, 1
          %s279 = smul.addr %s278, 4
          %s280 = scalar_lea.vmem %s2, %s279
        $region28: #{forward.1} parent=19 // pred_fallthru
          _
        // Predicated region
        $region29: #{forward.1} parent=19 // pred_check
          %p281 = pneg %p126
        $region30: #{forward.1} parent=19 // pred_check_branch
          %283 = sbr.rel (%p281) target = $region32
        $region31: #{forward.1} parent=19 // pred_region
          %s284 = sand.u32 %s116, 1
          %s285 = scalar_lea.sflag [#allocation3], %s284
          %s286 = sand.u32 %s116, 1
          %s287 = smul.addr %s286, 1024
          %s288 = scalar_lea.vmem [#allocation2], %s287
          %s290 = ssub.s32 16384, 16384
          %291 = vsyncadd %s285, %s290
          %s292 = smul.addr %s23, 256
          %s293 = smul.addr %s292, 64
          %s294 = scalar_lea.hbm %s3, %s293
          %s295 = sshll.u32 %s288, 4
          %s296 = int_to_ptr.vmem [resolvable:$true] %s295
          %301 = dma.hbm_to_vmem [thread:$0]  %s294, 16384, %s296, %s285, 256, 256, 16
        $region32: #{forward.1} parent=19 // pred_fallthru
          _
        // Predicated region
        $region33: #{forward.1} parent=19 // pred_check
          %p302 = pneg %p152
        $region34: #{forward.1} parent=19 // pred_check_branch
          %304 = sbr.rel (%p302) target = $region36
        $region35: #{forward.1} parent=19 // pred_region
          %p305 = scmp.lt.s32.totalorder %s23, 1
          %s306 = scalar_select %p305, %s23, 1
          %s307 = smul.addr %s306, 4
          %s308 = scalar_lea.vmem %s4, %s307
        $region36: #{forward.1} parent=19 // pred_fallthru
          _
        // Predicated region
        $region37: #{forward.1} parent=19 // pred_check
          %p309 = pneg %p178
        $region38: #{forward.1} parent=19 // pred_check_branch
          %311 = sbr.rel (%p309) target = $region40
        $region39: #{forward.1} parent=19 // pred_region
          %p312 = scmp.lt.s32.totalorder %s23, 1
          %s313 = scalar_select %p312, %s23, 1
          %s314 = smul.addr %s313, 64
          %s315 = smul.addr %s314, 4
          %s316 = scalar_lea.vmem %s5, %s315
        $region40: #{forward.1} parent=19 // pred_fallthru
          _
        // Predicated region
        $region41: #{forward.1} parent=19 // pred_check
          %p317 = pneg %p204
        $region42: #{forward.1} parent=19 // pred_check_branch
          %319 = sbr.rel (%p317) target = $region44
        $region43: #{forward.1} parent=19 // pred_region
          %p320 = scmp.lt.s32.totalorder %s23, 1
          %s321 = scalar_select %p320, %s23, 1
          %s322 = scalar_lea.vmem %s6, %s321
        $region44: #{forward.1} parent=19 // pred_fallthru
          _
      $region20: #{forward.1} parent=5 // pred_fallthru
        _
      %p323 = scmp.le.s32.totalorder 1, %s16
      %p324 = scmp.lt.s32.totalorder %s16, 3
      %p325 = pnand %p323, %p324
      %p326 = pneg %p325
      // Predicated region
      $region45: #{forward.1} parent=5 // pred_check
        _
      $region46: #{forward.1} parent=5 // pred_check_branch
        %328 = sbr.rel (%p325) target = $region48
      $region47: #{forward.1} parent=5 // pred_region
        %s329 = ssub.s32 %s16, 1
        %s330 = sand.u32 %s119, 1
        %s331 = scalar_lea.sflag [#allocation3], %s330
        %s332 = sand.u32 %s119, 1
        %s333 = smul.addr %s332, 1024
        %s334 = scalar_lea.vmem [#allocation2], %s333
        // Predicated region
        $region49: #{forward.1} parent=47 // pred_check
          %p335 = pneg %p132
        $region50: #{forward.1} parent=47 // pred_check_branch
          %337 = sbr.rel (%p335) target = $region52
        $region51: #{forward.1} parent=47 // pred_region
          %338 = dma.done %s331, 16384
        $region52: #{forward.1} parent=47 // pred_fallthru
          _
        %s339 = smul.u32 2, %s26
        %p340 = scmp.lt.s32.totalorder %s339, 1
        %s341 = scalar_select %p340, %s339, 1
        %s342 = smul.addr %s341, 8
        %s343 = scalar_lea.vmem %s0, %s342
        %p344 = pneg %p54
        %p345 = pneg %p51
        %p346 = scmp.lt.s32.totalorder %s25, 1
        %s347 = scalar_select %p346, %s25, 1
        %s348 = smul.addr %s347, 32
        %s349 = smul.addr %s348, 4
        %s350 = scalar_lea.vmem %s1, %s349
        %p351 = pneg %p80
        %p352 = pneg %p77
        %p353 = scmp.lt.s32.totalorder %s25, 1
        %s354 = scalar_select %p353, %s25, 1
        %s355 = smul.addr %s354, 4
        %s356 = scalar_lea.vmem %s2, %s355
        %p357 = pneg %p106
        %p358 = pneg %p103
        %s359 = sand.u32 %s119, 1
        %s360 = scalar_lea.sflag [#allocation3], %s359
        %s361 = sand.u32 %s119, 1
        %s362 = smul.addr %s361, 1024
        %s363 = scalar_lea.vmem [#allocation2], %s362
        %p364 = pneg %p132
        %p365 = pneg %p129
        %p366 = scmp.lt.s32.totalorder %s25, 1
        %s367 = scalar_select %p366, %s25, 1
        %s368 = smul.addr %s367, 4
        %s369 = scalar_lea.vmem %s4, %s368
        %p370 = pneg %p158
        %p371 = pneg %p155
        %p372 = scmp.lt.s32.totalorder %s25, 1
        %s373 = scalar_select %p372, %s25, 1
        %s374 = smul.addr %s373, 64
        %s375 = smul.addr %s374, 4
        %s376 = scalar_lea.vmem %s5, %s375
        %p377 = pneg %p184
        %p378 = pneg %p181
        %p379 = scmp.lt.s32.totalorder %s25, 1
        %s380 = scalar_select %p379, %s25, 1
        %s381 = scalar_lea.vmem %s6, %s380
        %p382 = pneg %p210
        %p383 = pneg %p207
        %p384 = pneg %p238
        %p385 = pneg %p235
        %s386 = smul.u32 2, %s26
        %p387 = scmp.lt.s32.totalorder %s25, 1
        %s388 = scalar_select %p387, %s25, 1
        %p389 = scmp.lt.s32.totalorder %s386, 1
        %s390 = scalar_select %p389, %s386, 1
        %s391 = smul.addr %s388, 2
        %s392 = sadd.s32 %s390, %s391
        %s393 = smul.addr %s392, 8
        %s394 = scalar_lea.vmem %s7, %s393
        %s395 = smul.u32 2, %s26
        %p396 = scmp.lt.s32.totalorder %s395, 1
        %s397 = scalar_select %p396, %s395, 1
        %s398 = smul.addr %s397, 8
        %s399 = scalar_lea.vmem %s0, %s398
        %s400 = smul.u32 2, %s26
        %p401 = scmp.lt.s32.totalorder %s25, 1
        %s402 = scalar_select %p401, %s25, 1
        %s403 = smul.addr %s402, 32
        %s404 = smul.addr %s403, 4
        %s405 = scalar_lea.vmem %s1, %s404
        %p406 = scmp.lt.s32.totalorder %s25, 1
        %s407 = scalar_select %p406, %s25, 1
        %s408 = smul.addr %s407, 4
        %s409 = scalar_lea.vmem %s2, %s408
        %p410 = scmp.lt.s32.totalorder %s25, 1
        %s411 = scalar_select %p410, %s25, 1
        %s412 = smul.addr %s411, 4
        %s413 = scalar_lea.vmem %s4, %s412
        %p414 = scmp.lt.s32.totalorder %s25, 1
        %s415 = scalar_select %p414, %s25, 1
        %s416 = smul.addr %s415, 64
        %s417 = smul.addr %s416, 4
        %s418 = scalar_lea.vmem %s5, %s417
        %p419 = scmp.lt.s32.totalorder %s25, 1
        %s420 = scalar_select %p419, %s25, 1
        %s421 = scalar_lea.vmem %s6, %s420
        %s422 = smul.u32 2, %s26
        %p423 = scmp.lt.s32.totalorder %s25, 1
        %s424 = scalar_select %p423, %s25, 1
        %p425 = scmp.lt.s32.totalorder %s422, 1
        %s426 = scalar_select %p425, %s422, 1
        %s427 = smul.addr %s424, 2
        %s428 = sadd.s32 %s426, %s427
        %s429 = smul.addr %s428, 8
        %s430 = scalar_lea.vmem %s7, %s429
        %s431 = smul.u32 2, %s26
        %v433 = vld [vmem:[%s399] sm:$0xff]
        %v434 = vld [vmem:[%s399 + $0x8] sm:$0xff]
        %v435 = vpack.c.bf16 %v434, %v433
        %v436 = vld [vmem:[%s405] sm:$0xff]
        %v437 = vld [vmem:[%s405 + $0x8] sm:$0xff]
        %v438 = vld [vmem:[%s405 + $0x10] sm:$0xff]
        %v439 = vld [vmem:[%s405 + $0x18] sm:$0xff]
        %v440 = vld [vmem:[%s405 + $0x20] sm:$0xff]
        %v441 = vld [vmem:[%s405 + $0x28] sm:$0xff]
        %v442 = vld [vmem:[%s405 + $0x30] sm:$0xff]
        %v443 = vld [vmem:[%s405 + $0x38] sm:$0xff]
        %v444 = vld [vmem:[%s405 + $0x40] sm:$0xff]
        %v445 = vld [vmem:[%s405 + $0x48] sm:$0xff]
        %v446 = vld [vmem:[%s405 + $0x50] sm:$0xff]
        %v447 = vld [vmem:[%s405 + $0x58] sm:$0xff]
        %v448 = vld [vmem:[%s405 + $0x60] sm:$0xff]
        %v449 = vld [vmem:[%s405 + $0x68] sm:$0xff]
        %v450 = vld [vmem:[%s405 + $0x70] sm:$0xff]
        %v451 = vld [vmem:[%s405 + $0x78] sm:$0xff]
        %v468 = vunpack.c.l.b16 %v436
        %v469 = vunpack.c.h.b16 %v436
        %v470 = vunpack.c.l.b16 %v437
        %v471 = vunpack.c.h.b16 %v437
        %v472 = vunpack.c.l.b16 %v438
        %v473 = vunpack.c.h.b16 %v438
        %v474 = vunpack.c.l.b16 %v439
        %v475 = vunpack.c.h.b16 %v439
        %v476 = vunpack.c.l.b16 %v440
        %v477 = vunpack.c.h.b16 %v440
        %v478 = vunpack.c.l.b16 %v441
        %v479 = vunpack.c.h.b16 %v441
        %v480 = vunpack.c.l.b16 %v442
        %v481 = vunpack.c.h.b16 %v442
        %v482 = vunpack.c.l.b16 %v443
        %v483 = vunpack.c.h.b16 %v443
        %v484 = vunpack.c.l.b16 %v444
        %v485 = vunpack.c.h.b16 %v444
        %v486 = vunpack.c.l.b16 %v445
        %v487 = vunpack.c.h.b16 %v445
        %v488 = vunpack.c.l.b16 %v446
        %v489 = vunpack.c.h.b16 %v446
        %v490 = vunpack.c.l.b16 %v447
        %v491 = vunpack.c.h.b16 %v447
        %v492 = vunpack.c.l.b16 %v448
        %v493 = vunpack.c.h.b16 %v448
        %v494 = vunpack.c.l.b16 %v449
        %v495 = vunpack.c.h.b16 %v449
        %v496 = vunpack.c.l.b16 %v450
        %v497 = vunpack.c.h.b16 %v450
        %v498 = vunpack.c.l.b16 %v451
        %v499 = vunpack.c.h.b16 %v451
        %v500 = vpack.c.b16 %v472, %v468
        %v501 = vpack.c.b16 %v473, %v469
        %v502 = vpack.c.b16 %v474, %v470
        %v503 = vpack.c.b16 %v475, %v471
        %v504 = vpack.c.b16 %v480, %v476
        %v505 = vpack.c.b16 %v481, %v477
        %v506 = vpack.c.b16 %v482, %v478
        %v507 = vpack.c.b16 %v483, %v479
        %v508 = vpack.c.b16 %v488, %v484
        %v509 = vpack.c.b16 %v489, %v485
        %v510 = vpack.c.b16 %v490, %v486
        %v511 = vpack.c.b16 %v491, %v487
        %v512 = vpack.c.b16 %v496, %v492
        %v513 = vpack.c.b16 %v497, %v493
        %v514 = vpack.c.b16 %v498, %v494
        %v515 = vpack.c.b16 %v499, %v495
        %vm532 = vcmask 523264
        %v534 = vsel %vm532, %v435, 0
        %536 = vmatprep.subr.bf16.mxu0 %v501
        %537 = vmatpush1.bf16.msra.mxu0 %v500
        %538 = vmatprep.subr.bf16.mxu0 %v505
        %539 = vmatpush1.bf16.msra.mxu0 %v504
        %540 = vmatprep.subr.bf16.mxu0 %v509
        %541 = vmatpush1.bf16.msra.mxu0 %v508
        %542 = vmatprep.subr.bf16.mxu0 %v513
        %543 = vmatpush1.bf16.msra.mxu0 %v512
        %544 = vmatprep.subr.bf16.mxu0 0
        %545 = vmatpush1.bf16.msra.mxu0 0
        %546 = vmatprep.subr.bf16.mxu0 0
        %547 = vmatpush1.bf16.msra.mxu0 0
        %548 = vmatprep.subr.bf16.mxu0 0
        %549 = vmatpush1.bf16.msra.mxu0 0
        %550 = vmatprep.subr.bf16.mxu0 0
        %551 = vmatpush1.bf16.msra.mxu0 0
        %552 = vmatprep.subr.bf16.mxu0 0
        %553 = vmatpush1.bf16.msra.mxu0 0
        %554 = vmatprep.subr.bf16.mxu0 0
        %555 = vmatpush1.bf16.msra.mxu0 0
        %556 = vmatprep.subr.bf16.mxu0 0
        %557 = vmatpush1.bf16.msra.mxu0 0
        %558 = vmatprep.subr.bf16.mxu0 0
        %559 = vmatpush1.bf16.msra.mxu0 0
        %560 = vmatprep.subr.bf16.mxu0 0
        %561 = vmatpush1.bf16.msra.mxu0 0
        %562 = vmatprep.subr.bf16.mxu0 0
        %563 = vmatpush1.bf16.msra.mxu0 0
        %564 = vmatprep.subr.bf16.mxu0 0
        %565 = vmatpush1.bf16.msra.mxu0 0
        %566 = vmatprep.subr.bf16.mxu0 0
        %567 = vmatpush1.bf16.msra.mxu0 0
        %568 = vmatprep.mubr.bf16.mxu0 0
        %569 = vmatmul.mubr.bf16.gmra.mrb[0].mxu0 %v534
        %v570 = vpop.f32.mrb[0].mxu0
        %v571 = vadd.f32 0.0, %v570
        %v572 = vpop.f32.mrb[0].mxu0
        %v573 = vadd.f32 0.0, %v572
        %v574 = vpop.f32.mrb[0].mxu0
        %v575 = vadd.f32 0.0, %v574
        %v576 = vpop.f32.mrb[0].mxu0
        %v577 = vadd.f32 0.0, %v576
        %578 = vdwg.mxu0
        %579 = vmatprep.subr.bf16.mxu0 %v503
        %580 = vmatpush1.bf16.msra.mxu0 %v502
        %581 = vmatprep.subr.bf16.mxu0 %v507
        %582 = vmatpush1.bf16.msra.mxu0 %v506
        %583 = vmatprep.subr.bf16.mxu0 %v511
        %584 = vmatpush1.bf16.msra.mxu0 %v510
        %585 = vmatprep.subr.bf16.mxu0 %v515
        %586 = vmatpush1.bf16.msra.mxu0 %v514
        %587 = vmatprep.subr.bf16.mxu0 0
        %588 = vmatpush1.bf16.msra.mxu0 0
        %589 = vmatprep.subr.bf16.mxu0 0
        %590 = vmatpush1.bf16.msra.mxu0 0
        %591 = vmatprep.subr.bf16.mxu0 0
        %592 = vmatpush1.bf16.msra.mxu0 0
        %593 = vmatprep.subr.bf16.mxu0 0
        %594 = vmatpush1.bf16.msra.mxu0 0
        %595 = vmatprep.subr.bf16.mxu0 0
        %596 = vmatpush1.bf16.msra.mxu0 0
        %597 = vmatprep.subr.bf16.mxu0 0
        %598 = vmatpush1.bf16.msra.mxu0 0
        %599 = vmatprep.subr.bf16.mxu0 0
        %600 = vmatpush1.bf16.msra.mxu0 0
        %601 = vmatprep.subr.bf16.mxu0 0
        %602 = vmatpush1.bf16.msra.mxu0 0
        %603 = vmatprep.subr.bf16.mxu0 0
        %604 = vmatpush1.bf16.msra.mxu0 0
        %605 = vmatprep.subr.bf16.mxu0 0
        %606 = vmatpush1.bf16.msra.mxu0 0
        %607 = vmatprep.subr.bf16.mxu0 0
        %608 = vmatpush1.bf16.msra.mxu0 0
        %609 = vmatprep.subr.bf16.mxu0 0
        %610 = vmatpush1.bf16.msra.mxu0 0
        %611 = vmatprep.mubr.bf16.mxu0 0
        %612 = vmatmul.mubr.bf16.gmra.mrb[0].mxu0 %v534
        %v613 = vpop.f32.mrb[0].mxu0
        %v614 = vadd.f32 0.0, %v613
        %v615 = vpop.f32.mrb[0].mxu0
        %v616 = vadd.f32 0.0, %v615
        %v617 = vpop.f32.mrb[0].mxu0
        %v618 = vadd.f32 0.0, %v617
        %v619 = vpop.f32.mrb[0].mxu0
        %v620 = vadd.f32 0.0, %v619
        %621 = vdwg.mxu0
        %v622 = vpack.c.bf16 %v575, %v571
        %v623 = vpack.c.bf16 %v577, %v573
        %v624 = vpack.c.bf16 %v618, %v614
        %v625 = vpack.c.bf16 %v620, %v616
        %v626 = vld [vmem:[%s409] sm:$0xf]
        %v628 = vlaneseq
        %v629 = vshrl.u32 %v628, 7
        %v630 = vsub.s32 0, %v629
        %v631 = vrot.slane %v626, %v630
        %v632 = vlaneseq
        %v633 = vshrl.u32 %v632, 7
        %v634 = vsub.s32 1, %v633
        %v635 = vrot.slane %v626, %v634
        %v636 = vlaneseq
        %v637 = vshrl.u32 %v636, 7
        %v638 = vsub.s32 2, %v637
        %v639 = vrot.slane %v626, %v638
        %v640 = vlaneseq
        %v641 = vshrl.u32 %v640, 7
        %v642 = vsub.s32 3, %v641
        %v643 = vrot.slane %v626, %v642
        %v648 = vpack.c.bf16 %v631, %v631
        %v649 = vpack.c.bf16 %v635, %v635
        %v650 = vpack.c.bf16 %v639, %v639
        %v651 = vpack.c.bf16 %v643, %v643
        %v653 = vpack.i.b16 %v648, %v648
        %v655 = vlaneseq
        %v656 = vshrl.u32 %v655, 7
        %v657 = vsub.s32 0, %v656
        %v658 = vrot.slane %v653, %v657
        %v660 = vpack.i.b16 %v649, %v649
        %v662 = vlaneseq
        %v663 = vshrl.u32 %v662, 7
        %v664 = vsub.s32 0, %v663
        %v665 = vrot.slane %v660, %v664
        %v667 = vpack.i.b16 %v650, %v650
        %v669 = vlaneseq
        %v670 = vshrl.u32 %v669, 7
        %v671 = vsub.s32 0, %v670
        %v672 = vrot.slane %v667, %v671
        %v674 = vpack.i.b16 %v651, %v651
        %v676 = vlaneseq
        %v677 = vshrl.u32 %v676, 7
        %v678 = vsub.s32 0, %v677
        %v679 = vrot.slane %v674, %v678
        %v680 = vadd.bf16 %v622, %v658
        %v681 = vadd.bf16 %v623, %v665
        %v682 = vadd.bf16 %v624, %v672
        %v683 = vadd.bf16 %v625, %v679
        %v684 = vtanh.bf16.pop %v680
        %v685 = vtanh.bf16.pop %v681
        %v686 = vtanh.bf16.pop %v682
        %v687 = vtanh.bf16.pop %v683
        %v688 = vld [vmem:[%s334] sm:$0xff]
        %v689 = vld [vmem:[%s334 + $0x8] sm:$0xff]
        %v690 = vld [vmem:[%s334 + $0x10] sm:$0xff]
        %v691 = vld [vmem:[%s334 + $0x18] sm:$0xff]
        %v692 = vld [vmem:[%s334 + $0x20] sm:$0xff]
        %v693 = vld [vmem:[%s334 + $0x28] sm:$0xff]
        %v694 = vld [vmem:[%s334 + $0x30] sm:$0xff]
        %v695 = vld [vmem:[%s334 + $0x38] sm:$0xff]
        %v696 = vld [vmem:[%s334 + $0x40] sm:$0xff]
        %v697 = vld [vmem:[%s334 + $0x48] sm:$0xff]
        %v698 = vld [vmem:[%s334 + $0x50] sm:$0xff]
        %v699 = vld [vmem:[%s334 + $0x58] sm:$0xff]
        %v700 = vld [vmem:[%s334 + $0x60] sm:$0xff]
        %v701 = vld [vmem:[%s334 + $0x68] sm:$0xff]
        %v702 = vld [vmem:[%s334 + $0x70] sm:$0xff]
        %v703 = vld [vmem:[%s334 + $0x78] sm:$0xff]
        %v704 = vld [vmem:[%s334 + $0x80] sm:$0xff]
        %v705 = vld [vmem:[%s334 + $0x88] sm:$0xff]
        %v706 = vld [vmem:[%s334 + $0x90] sm:$0xff]
        %v707 = vld [vmem:[%s334 + $0x98] sm:$0xff]
        %v708 = vld [vmem:[%s334 + $0xa0] sm:$0xff]
        %v709 = vld [vmem:[%s334 + $0xa8] sm:$0xff]
        %v710 = vld [vmem:[%s334 + $0xb0] sm:$0xff]
        %v711 = vld [vmem:[%s334 + $0xb8] sm:$0xff]
        %v712 = vld [vmem:[%s334 + $0xc0] sm:$0xff]
        %v713 = vld [vmem:[%s334 + $0xc8] sm:$0xff]
        %v714 = vld [vmem:[%s334 + $0xd0] sm:$0xff]
        %v715 = vld [vmem:[%s334 + $0xd8] sm:$0xff]
        %v716 = vld [vmem:[%s334 + $0xe0] sm:$0xff]
        %v717 = vld [vmem:[%s334 + $0xe8] sm:$0xff]
        %v718 = vld [vmem:[%s334 + $0xf0] sm:$0xff]
        %v719 = vld [vmem:[%s334 + $0xf8] sm:$0xff]
        %v720 = vld [vmem:[%s334 + $0x100] sm:$0xff]
        %v721 = vld [vmem:[%s334 + $0x108] sm:$0xff]
        %v722 = vld [vmem:[%s334 + $0x110] sm:$0xff]
        %v723 = vld [vmem:[%s334 + $0x118] sm:$0xff]
        %v724 = vld [vmem:[%s334 + $0x120] sm:$0xff]
        %v725 = vld [vmem:[%s334 + $0x128] sm:$0xff]
        %v726 = vld [vmem:[%s334 + $0x130] sm:$0xff]
        %v727 = vld [vmem:[%s334 + $0x138] sm:$0xff]
        %v728 = vld [vmem:[%s334 + $0x140] sm:$0xff]
        %v729 = vld [vmem:[%s334 + $0x148] sm:$0xff]
        %v730 = vld [vmem:[%s334 + $0x150] sm:$0xff]
        %v731 = vld [vmem:[%s334 + $0x158] sm:$0xff]
        %v732 = vld [vmem:[%s334 + $0x160] sm:$0xff]
        %v733 = vld [vmem:[%s334 + $0x168] sm:$0xff]
        %v734 = vld [vmem:[%s334 + $0x170] sm:$0xff]
        %v735 = vld [vmem:[%s334 + $0x178] sm:$0xff]
        %v736 = vld [vmem:[%s334 + $0x180] sm:$0xff]
        %v737 = vld [vmem:[%s334 + $0x188] sm:$0xff]
        %v738 = vld [vmem:[%s334 + $0x190] sm:$0xff]
        %v739 = vld [vmem:[%s334 + $0x198] sm:$0xff]
        %v740 = vld [vmem:[%s334 + $0x1a0] sm:$0xff]
        %v741 = vld [vmem:[%s334 + $0x1a8] sm:$0xff]
        %v742 = vld [vmem:[%s334 + $0x1b0] sm:$0xff]
        %v743 = vld [vmem:[%s334 + $0x1b8] sm:$0xff]
        %v744 = vld [vmem:[%s334 + $0x1c0] sm:$0xff]
        %v745 = vld [vmem:[%s334 + $0x1c8] sm:$0xff]
        %v746 = vld [vmem:[%s334 + $0x1d0] sm:$0xff]
        %v747 = vld [vmem:[%s334 + $0x1d8] sm:$0xff]
        %v748 = vld [vmem:[%s334 + $0x1e0] sm:$0xff]
        %v749 = vld [vmem:[%s334 + $0x1e8] sm:$0xff]
        %v750 = vld [vmem:[%s334 + $0x1f0] sm:$0xff]
        %v751 = vld [vmem:[%s334 + $0x1f8] sm:$0xff]
        %v752 = vld [vmem:[%s334 + $0x200] sm:$0xff]
        %v753 = vld [vmem:[%s334 + $0x208] sm:$0xff]
        %v754 = vld [vmem:[%s334 + $0x210] sm:$0xff]
        %v755 = vld [vmem:[%s334 + $0x218] sm:$0xff]
        %v756 = vld [vmem:[%s334 + $0x220] sm:$0xff]
        %v757 = vld [vmem:[%s334 + $0x228] sm:$0xff]
        %v758 = vld [vmem:[%s334 + $0x230] sm:$0xff]
        %v759 = vld [vmem:[%s334 + $0x238] sm:$0xff]
        %v760 = vld [vmem:[%s334 + $0x240] sm:$0xff]
        %v761 = vld [vmem:[%s334 + $0x248] sm:$0xff]
        %v762 = vld [vmem:[%s334 + $0x250] sm:$0xff]
        %v763 = vld [vmem:[%s334 + $0x258] sm:$0xff]
        %v764 = vld [vmem:[%s334 + $0x260] sm:$0xff]
        %v765 = vld [vmem:[%s334 + $0x268] sm:$0xff]
        %v766 = vld [vmem:[%s334 + $0x270] sm:$0xff]
        %v767 = vld [vmem:[%s334 + $0x278] sm:$0xff]
        %v768 = vld [vmem:[%s334 + $0x280] sm:$0xff]
        %v769 = vld [vmem:[%s334 + $0x288] sm:$0xff]
        %v770 = vld [vmem:[%s334 + $0x290] sm:$0xff]
        %v771 = vld [vmem:[%s334 + $0x298] sm:$0xff]
        %v772 = vld [vmem:[%s334 + $0x2a0] sm:$0xff]
        %v773 = vld [vmem:[%s334 + $0x2a8] sm:$0xff]
        %v774 = vld [vmem:[%s334 + $0x2b0] sm:$0xff]
        %v775 = vld [vmem:[%s334 + $0x2b8] sm:$0xff]
        %v776 = vld [vmem:[%s334 + $0x2c0] sm:$0xff]
        %v777 = vld [vmem:[%s334 + $0x2c8] sm:$0xff]
        %v778 = vld [vmem:[%s334 + $0x2d0] sm:$0xff]
        %v779 = vld [vmem:[%s334 + $0x2d8] sm:$0xff]
        %v780 = vld [vmem:[%s334 + $0x2e0] sm:$0xff]
        %v781 = vld [vmem:[%s334 + $0x2e8] sm:$0xff]
        %v782 = vld [vmem:[%s334 + $0x2f0] sm:$0xff]
        %v783 = vld [vmem:[%s334 + $0x2f8] sm:$0xff]
        %v784 = vld [vmem:[%s334 + $0x300] sm:$0xff]
        %v785 = vld [vmem:[%s334 + $0x308] sm:$0xff]
        %v786 = vld [vmem:[%s334 + $0x310] sm:$0xff]
        %v787 = vld [vmem:[%s334 + $0x318] sm:$0xff]
        %v788 = vld [vmem:[%s334 + $0x320] sm:$0xff]
        %v789 = vld [vmem:[%s334 + $0x328] sm:$0xff]
        %v790 = vld [vmem:[%s334 + $0x330] sm:$0xff]
        %v791 = vld [vmem:[%s334 + $0x338] sm:$0xff]
        %v792 = vld [vmem:[%s334 + $0x340] sm:$0xff]
        %v793 = vld [vmem:[%s334 + $0x348] sm:$0xff]
        %v794 = vld [vmem:[%s334 + $0x350] sm:$0xff]
        %v795 = vld [vmem:[%s334 + $0x358] sm:$0xff]
        %v796 = vld [vmem:[%s334 + $0x360] sm:$0xff]
        %v797 = vld [vmem:[%s334 + $0x368] sm:$0xff]
        %v798 = vld [vmem:[%s334 + $0x370] sm:$0xff]
        %v799 = vld [vmem:[%s334 + $0x378] sm:$0xff]
        %v800 = vld [vmem:[%s334 + $0x380] sm:$0xff]
        %v801 = vld [vmem:[%s334 + $0x388] sm:$0xff]
        %v802 = vld [vmem:[%s334 + $0x390] sm:$0xff]
        %v803 = vld [vmem:[%s334 + $0x398] sm:$0xff]
        %v804 = vld [vmem:[%s334 + $0x3a0] sm:$0xff]
        %v805 = vld [vmem:[%s334 + $0x3a8] sm:$0xff]
        %v806 = vld [vmem:[%s334 + $0x3b0] sm:$0xff]
        %v807 = vld [vmem:[%s334 + $0x3b8] sm:$0xff]
        %v808 = vld [vmem:[%s334 + $0x3c0] sm:$0xff]
        %v809 = vld [vmem:[%s334 + $0x3c8] sm:$0xff]
        %v810 = vld [vmem:[%s334 + $0x3d0] sm:$0xff]
        %v811 = vld [vmem:[%s334 + $0x3d8] sm:$0xff]
        %v812 = vld [vmem:[%s334 + $0x3e0] sm:$0xff]
        %v813 = vld [vmem:[%s334 + $0x3e8] sm:$0xff]
        %v814 = vld [vmem:[%s334 + $0x3f0] sm:$0xff]
        %v815 = vld [vmem:[%s334 + $0x3f8] sm:$0xff]
        %v944 = vunpack.c.l.b16 %v688
        %v945 = vunpack.c.h.b16 %v688
        %v946 = vunpack.c.l.b16 %v689
        %v947 = vunpack.c.h.b16 %v689
        %v948 = vunpack.c.l.b16 %v690
        %v949 = vunpack.c.h.b16 %v690
        %v950 = vunpack.c.l.b16 %v691
        %v951 = vunpack.c.h.b16 %v691
        %v952 = vunpack.c.l.b16 %v692
        %v953 = vunpack.c.h.b16 %v692
        %v954 = vunpack.c.l.b16 %v693
        %v955 = vunpack.c.h.b16 %v693
        %v956 = vunpack.c.l.b16 %v694
        %v957 = vunpack.c.h.b16 %v694
        %v958 = vunpack.c.l.b16 %v695
        %v959 = vunpack.c.h.b16 %v695
        %v960 = vunpack.c.l.b16 %v696
        %v961 = vunpack.c.h.b16 %v696
        %v962 = vunpack.c.l.b16 %v697
        %v963 = vunpack.c.h.b16 %v697
        %v964 = vunpack.c.l.b16 %v698
        %v965 = vunpack.c.h.b16 %v698
        %v966 = vunpack.c.l.b16 %v699
        %v967 = vunpack.c.h.b16 %v699
        %v968 = vunpack.c.l.b16 %v700
        %v969 = vunpack.c.h.b16 %v700
        %v970 = vunpack.c.l.b16 %v701
        %v971 = vunpack.c.h.b16 %v701
        %v972 = vunpack.c.l.b16 %v702
        %v973 = vunpack.c.h.b16 %v702
        %v974 = vunpack.c.l.b16 %v703
        %v975 = vunpack.c.h.b16 %v703
        %v976 = vunpack.c.l.b16 %v704
        %v977 = vunpack.c.h.b16 %v704
        %v978 = vunpack.c.l.b16 %v705
        %v979 = vunpack.c.h.b16 %v705
        %v980 = vunpack.c.l.b16 %v706
        %v981 = vunpack.c.h.b16 %v706
        %v982 = vunpack.c.l.b16 %v707
        %v983 = vunpack.c.h.b16 %v707
        %v984 = vunpack.c.l.b16 %v708
        %v985 = vunpack.c.h.b16 %v708
        %v986 = vunpack.c.l.b16 %v709
        %v987 = vunpack.c.h.b16 %v709
        %v988 = vunpack.c.l.b16 %v710
        %v989 = vunpack.c.h.b16 %v710
        %v990 = vunpack.c.l.b16 %v711
        %v991 = vunpack.c.h.b16 %v711
        %v992 = vunpack.c.l.b16 %v712
        %v993 = vunpack.c.h.b16 %v712
        %v994 = vunpack.c.l.b16 %v713
        %v995 = vunpack.c.h.b16 %v713
        %v996 = vunpack.c.l.b16 %v714
        %v997 = vunpack.c.h.b16 %v714
        %v998 = vunpack.c.l.b16 %v715
        %v999 = vunpack.c.h.b16 %v715
        %v1000 = vunpack.c.l.b16 %v716
        %v1001 = vunpack.c.h.b16 %v716
        %v1002 = vunpack.c.l.b16 %v717
        %v1003 = vunpack.c.h.b16 %v717
        %v1004 = vunpack.c.l.b16 %v718
        %v1005 = vunpack.c.h.b16 %v718
        %v1006 = vunpack.c.l.b16 %v719
        %v1007 = vunpack.c.h.b16 %v719
        %v1008 = vunpack.c.l.b16 %v720
        %v1009 = vunpack.c.h.b16 %v720
        %v1010 = vunpack.c.l.b16 %v721
        %v1011 = vunpack.c.h.b16 %v721
        %v1012 = vunpack.c.l.b16 %v722
        %v1013 = vunpack.c.h.b16 %v722
        %v1014 = vunpack.c.l.b16 %v723
        %v1015 = vunpack.c.h.b16 %v723
        %v1016 = vunpack.c.l.b16 %v724
        %v1017 = vunpack.c.h.b16 %v724
        %v1018 = vunpack.c.l.b16 %v725
        %v1019 = vunpack.c.h.b16 %v725
        %v1020 = vunpack.c.l.b16 %v726
        %v1021 = vunpack.c.h.b16 %v726
        %v1022 = vunpack.c.l.b16 %v727
        %v1023 = vunpack.c.h.b16 %v727
        %v1024 = vunpack.c.l.b16 %v728
        %v1025 = vunpack.c.h.b16 %v728
        %v1026 = vunpack.c.l.b16 %v729
        %v1027 = vunpack.c.h.b16 %v729
        %v1028 = vunpack.c.l.b16 %v730
        %v1029 = vunpack.c.h.b16 %v730
        %v1030 = vunpack.c.l.b16 %v731
        %v1031 = vunpack.c.h.b16 %v731
        %v1032 = vunpack.c.l.b16 %v732
        %v1033 = vunpack.c.h.b16 %v732
        %v1034 = vunpack.c.l.b16 %v733
        %v1035 = vunpack.c.h.b16 %v733
        %v1036 = vunpack.c.l.b16 %v734
        %v1037 = vunpack.c.h.b16 %v734
        %v1038 = vunpack.c.l.b16 %v735
        %v1039 = vunpack.c.h.b16 %v735
        %v1040 = vunpack.c.l.b16 %v736
        %v1041 = vunpack.c.h.b16 %v736
        %v1042 = vunpack.c.l.b16 %v737
        %v1043 = vunpack.c.h.b16 %v737
        %v1044 = vunpack.c.l.b16 %v738
        %v1045 = vunpack.c.h.b16 %v738
        %v1046 = vunpack.c.l.b16 %v739
        %v1047 = vunpack.c.h.b16 %v739
        %v1048 = vunpack.c.l.b16 %v740
        %v1049 = vunpack.c.h.b16 %v740
        %v1050 = vunpack.c.l.b16 %v741
        %v1051 = vunpack.c.h.b16 %v741
        %v1052 = vunpack.c.l.b16 %v742
        %v1053 = vunpack.c.h.b16 %v742
        %v1054 = vunpack.c.l.b16 %v743
        %v1055 = vunpack.c.h.b16 %v743
        %v1056 = vunpack.c.l.b16 %v744
        %v1057 = vunpack.c.h.b16 %v744
        %v1058 = vunpack.c.l.b16 %v745
        %v1059 = vunpack.c.h.b16 %v745
        %v1060 = vunpack.c.l.b16 %v746
        %v1061 = vunpack.c.h.b16 %v746
        %v1062 = vunpack.c.l.b16 %v747
        %v1063 = vunpack.c.h.b16 %v747
        %v1064 = vunpack.c.l.b16 %v748
        %v1065 = vunpack.c.h.b16 %v748
        %v1066 = vunpack.c.l.b16 %v749
        %v1067 = vunpack.c.h.b16 %v749
        %v1068 = vunpack.c.l.b16 %v750
        %v1069 = vunpack.c.h.b16 %v750
        %v1070 = vunpack.c.l.b16 %v751
        %v1071 = vunpack.c.h.b16 %v751
        %v1072 = vunpack.c.l.b16 %v752
        %v1073 = vunpack.c.h.b16 %v752
        %v1074 = vunpack.c.l.b16 %v753
        %v1075 = vunpack.c.h.b16 %v753
        %v1076 = vunpack.c.l.b16 %v754
        %v1077 = vunpack.c.h.b16 %v754
        %v1078 = vunpack.c.l.b16 %v755
        %v1079 = vunpack.c.h.b16 %v755
        %v1080 = vunpack.c.l.b16 %v756
        %v1081 = vunpack.c.h.b16 %v756
        %v1082 = vunpack.c.l.b16 %v757
        %v1083 = vunpack.c.h.b16 %v757
        %v1084 = vunpack.c.l.b16 %v758
        %v1085 = vunpack.c.h.b16 %v758
        %v1086 = vunpack.c.l.b16 %v759
        %v1087 = vunpack.c.h.b16 %v759
        %v1088 = vunpack.c.l.b16 %v760
        %v1089 = vunpack.c.h.b16 %v760
        %v1090 = vunpack.c.l.b16 %v761
        %v1091 = vunpack.c.h.b16 %v761
        %v1092 = vunpack.c.l.b16 %v762
        %v1093 = vunpack.c.h.b16 %v762
        %v1094 = vunpack.c.l.b16 %v763
        %v1095 = vunpack.c.h.b16 %v763
        %v1096 = vunpack.c.l.b16 %v764
        %v1097 = vunpack.c.h.b16 %v764
        %v1098 = vunpack.c.l.b16 %v765
        %v1099 = vunpack.c.h.b16 %v765
        %v1100 = vunpack.c.l.b16 %v766
        %v1101 = vunpack.c.h.b16 %v766
        %v1102 = vunpack.c.l.b16 %v767
        %v1103 = vunpack.c.h.b16 %v767
        %v1104 = vunpack.c.l.b16 %v768
        %v1105 = vunpack.c.h.b16 %v768
        %v1106 = vunpack.c.l.b16 %v769
        %v1107 = vunpack.c.h.b16 %v769
        %v1108 = vunpack.c.l.b16 %v770
        %v1109 = vunpack.c.h.b16 %v770
        %v1110 = vunpack.c.l.b16 %v771
        %v1111 = vunpack.c.h.b16 %v771
        %v1112 = vunpack.c.l.b16 %v772
        %v1113 = vunpack.c.h.b16 %v772
        %v1114 = vunpack.c.l.b16 %v773
        %v1115 = vunpack.c.h.b16 %v773
        %v1116 = vunpack.c.l.b16 %v774
        %v1117 = vunpack.c.h.b16 %v774
        %v1118 = vunpack.c.l.b16 %v775
        %v1119 = vunpack.c.h.b16 %v775
        %v1120 = vunpack.c.l.b16 %v776
        %v1121 = vunpack.c.h.b16 %v776
        %v1122 = vunpack.c.l.b16 %v777
        %v1123 = vunpack.c.h.b16 %v777
        %v1124 = vunpack.c.l.b16 %v778
        %v1125 = vunpack.c.h.b16 %v778
        %v1126 = vunpack.c.l.b16 %v779
        %v1127 = vunpack.c.h.b16 %v779
        %v1128 = vunpack.c.l.b16 %v780
        %v1129 = vunpack.c.h.b16 %v780
        %v1130 = vunpack.c.l.b16 %v781
        %v1131 = vunpack.c.h.b16 %v781
        %v1132 = vunpack.c.l.b16 %v782
        %v1133 = vunpack.c.h.b16 %v782
        %v1134 = vunpack.c.l.b16 %v783
        %v1135 = vunpack.c.h.b16 %v783
        %v1136 = vunpack.c.l.b16 %v784
        %v1137 = vunpack.c.h.b16 %v784
        %v1138 = vunpack.c.l.b16 %v785
        %v1139 = vunpack.c.h.b16 %v785
        %v1140 = vunpack.c.l.b16 %v786
        %v1141 = vunpack.c.h.b16 %v786
        %v1142 = vunpack.c.l.b16 %v787
        %v1143 = vunpack.c.h.b16 %v787
        %v1144 = vunpack.c.l.b16 %v788
        %v1145 = vunpack.c.h.b16 %v788
        %v1146 = vunpack.c.l.b16 %v789
        %v1147 = vunpack.c.h.b16 %v789
        %v1148 = vunpack.c.l.b16 %v790
        %v1149 = vunpack.c.h.b16 %v790
        %v1150 = vunpack.c.l.b16 %v791
        %v1151 = vunpack.c.h.b16 %v791
        %v1152 = vunpack.c.l.b16 %v792
        %v1153 = vunpack.c.h.b16 %v792
        %v1154 = vunpack.c.l.b16 %v793
        %v1155 = vunpack.c.h.b16 %v793
        %v1156 = vunpack.c.l.b16 %v794
        %v1157 = vunpack.c.h.b16 %v794
        %v1158 = vunpack.c.l.b16 %v795
        %v1159 = vunpack.c.h.b16 %v795
        %v1160 = vunpack.c.l.b16 %v796
        %v1161 = vunpack.c.h.b16 %v796
        %v1162 = vunpack.c.l.b16 %v797
        %v1163 = vunpack.c.h.b16 %v797
        %v1164 = vunpack.c.l.b16 %v798
        %v1165 = vunpack.c.h.b16 %v798
        %v1166 = vunpack.c.l.b16 %v799
        %v1167 = vunpack.c.h.b16 %v799
        %v1168 = vunpack.c.l.b16 %v800
        %v1169 = vunpack.c.h.b16 %v800
        %v1170 = vunpack.c.l.b16 %v801
        %v1171 = vunpack.c.h.b16 %v801
        %v1172 = vunpack.c.l.b16 %v802
        %v1173 = vunpack.c.h.b16 %v802
        %v1174 = vunpack.c.l.b16 %v803
        %v1175 = vunpack.c.h.b16 %v803
        %v1176 = vunpack.c.l.b16 %v804
        %v1177 = vunpack.c.h.b16 %v804
        %v1178 = vunpack.c.l.b16 %v805
        %v1179 = vunpack.c.h.b16 %v805
        %v1180 = vunpack.c.l.b16 %v806
        %v1181 = vunpack.c.h.b16 %v806
        %v1182 = vunpack.c.l.b16 %v807
        %v1183 = vunpack.c.h.b16 %v807
        %v1184 = vunpack.c.l.b16 %v808
        %v1185 = vunpack.c.h.b16 %v808
        %v1186 = vunpack.c.l.b16 %v809
        %v1187 = vunpack.c.h.b16 %v809
        %v1188 = vunpack.c.l.b16 %v810
        %v1189 = vunpack.c.h.b16 %v810
        %v1190 = vunpack.c.l.b16 %v811
        %v1191 = vunpack.c.h.b16 %v811
        %v1192 = vunpack.c.l.b16 %v812
        %v1193 = vunpack.c.h.b16 %v812
        %v1194 = vunpack.c.l.b16 %v813
        %v1195 = vunpack.c.h.b16 %v813
        %v1196 = vunpack.c.l.b16 %v814
        %v1197 = vunpack.c.h.b16 %v814
        %v1198 = vunpack.c.l.b16 %v815
        %v1199 = vunpack.c.h.b16 %v815
        %v1200 = vpack.c.b16 %v948, %v944
        %v1201 = vpack.c.b16 %v949, %v945
        %v1202 = vpack.c.b16 %v950, %v946
        %v1203 = vpack.c.b16 %v951, %v947
        %v1204 = vpack.c.b16 %v956, %v952
        %v1205 = vpack.c.b16 %v957, %v953
        %v1206 = vpack.c.b16 %v958, %v954
        %v1207 = vpack.c.b16 %v959, %v955
        %v1208 = vpack.c.b16 %v964, %v960
        %v1209 = vpack.c.b16 %v965, %v961
        %v1210 = vpack.c.b16 %v966, %v962
        %v1211 = vpack.c.b16 %v967, %v963
        %v1212 = vpack.c.b16 %v972, %v968
        %v1213 = vpack.c.b16 %v973, %v969
        %v1214 = vpack.c.b16 %v974, %v970
        %v1215 = vpack.c.b16 %v975, %v971
        %v1216 = vpack.c.b16 %v980, %v976
        %v1217 = vpack.c.b16 %v981, %v977
        %v1218 = vpack.c.b16 %v982, %v978
        %v1219 = vpack.c.b16 %v983, %v979
        %v1220 = vpack.c.b16 %v988, %v984
        %v1221 = vpack.c.b16 %v989, %v985
        %v1222 = vpack.c.b16 %v990, %v986
        %v1223 = vpack.c.b16 %v991, %v987
        %v1224 = vpack.c.b16 %v996, %v992
        %v1225 = vpack.c.b16 %v997, %v993
        %v1226 = vpack.c.b16 %v998, %v994
        %v1227 = vpack.c.b16 %v999, %v995
        %v1228 = vpack.c.b16 %v1004, %v1000
        %v1229 = vpack.c.b16 %v1005, %v1001
        %v1230 = vpack.c.b16 %v1006, %v1002
        %v1231 = vpack.c.b16 %v1007, %v1003
        %v1232 = vpack.c.b16 %v1012, %v1008
        %v1233 = vpack.c.b16 %v1013, %v1009
        %v1234 = vpack.c.b16 %v1014, %v1010
        %v1235 = vpack.c.b16 %v1015, %v1011
        %v1236 = vpack.c.b16 %v1020, %v1016
        %v1237 = vpack.c.b16 %v1021, %v1017
        %v1238 = vpack.c.b16 %v1022, %v1018
        %v1239 = vpack.c.b16 %v1023, %v1019
        %v1240 = vpack.c.b16 %v1028, %v1024
        %v1241 = vpack.c.b16 %v1029, %v1025
        %v1242 = vpack.c.b16 %v1030, %v1026
        %v1243 = vpack.c.b16 %v1031, %v1027
        %v1244 = vpack.c.b16 %v1036, %v1032
        %v1245 = vpack.c.b16 %v1037, %v1033
        %v1246 = vpack.c.b16 %v1038, %v1034
        %v1247 = vpack.c.b16 %v1039, %v1035
        %v1248 = vpack.c.b16 %v1044, %v1040
        %v1249 = vpack.c.b16 %v1045, %v1041
        %v1250 = vpack.c.b16 %v1046, %v1042
        %v1251 = vpack.c.b16 %v1047, %v1043
        %v1252 = vpack.c.b16 %v1052, %v1048
        %v1253 = vpack.c.b16 %v1053, %v1049
        %v1254 = vpack.c.b16 %v1054, %v1050
        %v1255 = vpack.c.b16 %v1055, %v1051
        %v1256 = vpack.c.b16 %v1060, %v1056
        %v1257 = vpack.c.b16 %v1061, %v1057
        %v1258 = vpack.c.b16 %v1062, %v1058
        %v1259 = vpack.c.b16 %v1063, %v1059
        %v1260 = vpack.c.b16 %v1068, %v1064
        %v1261 = vpack.c.b16 %v1069, %v1065
        %v1262 = vpack.c.b16 %v1070, %v1066
        %v1263 = vpack.c.b16 %v1071, %v1067
        %v1264 = vpack.c.b16 %v1076, %v1072
        %v1265 = vpack.c.b16 %v1077, %v1073
        %v1266 = vpack.c.b16 %v1078, %v1074
        %v1267 = vpack.c.b16 %v1079, %v1075
        %v1268 = vpack.c.b16 %v1084, %v1080
        %v1269 = vpack.c.b16 %v1085, %v1081
        %v1270 = vpack.c.b16 %v1086, %v1082
        %v1271 = vpack.c.b16 %v1087, %v1083
        %v1272 = vpack.c.b16 %v1092, %v1088
        %v1273 = vpack.c.b16 %v1093, %v1089
        %v1274 = vpack.c.b16 %v1094, %v1090
        %v1275 = vpack.c.b16 %v1095, %v1091
        %v1276 = vpack.c.b16 %v1100, %v1096
        %v1277 = vpack.c.b16 %v1101, %v1097
        %v1278 = vpack.c.b16 %v1102, %v1098
        %v1279 = vpack.c.b16 %v1103, %v1099
        %v1280 = vpack.c.b16 %v1108, %v1104
        %v1281 = vpack.c.b16 %v1109, %v1105
        %v1282 = vpack.c.b16 %v1110, %v1106
        %v1283 = vpack.c.b16 %v1111, %v1107
        %v1284 = vpack.c.b16 %v1116, %v1112
        %v1285 = vpack.c.b16 %v1117, %v1113
        %v1286 = vpack.c.b16 %v1118, %v1114
        %v1287 = vpack.c.b16 %v1119, %v1115
        %v1288 = vpack.c.b16 %v1124, %v1120
        %v1289 = vpack.c.b16 %v1125, %v1121
        %v1290 = vpack.c.b16 %v1126, %v1122
        %v1291 = vpack.c.b16 %v1127, %v1123
        %v1292 = vpack.c.b16 %v1132, %v1128
        %v1293 = vpack.c.b16 %v1133, %v1129
        %v1294 = vpack.c.b16 %v1134, %v1130
        %v1295 = vpack.c.b16 %v1135, %v1131
        %v1296 = vpack.c.b16 %v1140, %v1136
        %v1297 = vpack.c.b16 %v1141, %v1137
        %v1298 = vpack.c.b16 %v1142, %v1138
        %v1299 = vpack.c.b16 %v1143, %v1139
        %v1300 = vpack.c.b16 %v1148, %v1144
        %v1301 = vpack.c.b16 %v1149, %v1145
        %v1302 = vpack.c.b16 %v1150, %v1146
        %v1303 = vpack.c.b16 %v1151, %v1147
        %v1304 = vpack.c.b16 %v1156, %v1152
        %v1305 = vpack.c.b16 %v1157, %v1153
        %v1306 = vpack.c.b16 %v1158, %v1154
        %v1307 = vpack.c.b16 %v1159, %v1155
        %v1308 = vpack.c.b16 %v1164, %v1160
        %v1309 = vpack.c.b16 %v1165, %v1161
        %v1310 = vpack.c.b16 %v1166, %v1162
        %v1311 = vpack.c.b16 %v1167, %v1163
        %v1312 = vpack.c.b16 %v1172, %v1168
        %v1313 = vpack.c.b16 %v1173, %v1169
        %v1314 = vpack.c.b16 %v1174, %v1170
        %v1315 = vpack.c.b16 %v1175, %v1171
        %v1316 = vpack.c.b16 %v1180, %v1176
        %v1317 = vpack.c.b16 %v1181, %v1177
        %v1318 = vpack.c.b16 %v1182, %v1178
        %v1319 = vpack.c.b16 %v1183, %v1179
        %v1320 = vpack.c.b16 %v1188, %v1184
        %v1321 = vpack.c.b16 %v1189, %v1185
        %v1322 = vpack.c.b16 %v1190, %v1186
        %v1323 = vpack.c.b16 %v1191, %v1187
        %v1324 = vpack.c.b16 %v1196, %v1192
        %v1325 = vpack.c.b16 %v1197, %v1193
        %v1326 = vpack.c.b16 %v1198, %v1194
        %v1327 = vpack.c.b16 %v1199, %v1195
        %1456 = vmatprep.subr.bf16.mxu0 %v1201
        %1457 = vmatpush1.bf16.msra.mxu0 %v1200
        %1458 = vmatprep.subr.bf16.mxu0 %v1205
        %1459 = vmatpush1.bf16.msra.mxu0 %v1204
        %1460 = vmatprep.subr.bf16.mxu0 %v1209
        %1461 = vmatpush1.bf16.msra.mxu0 %v1208
        %1462 = vmatprep.subr.bf16.mxu0 %v1213
        %1463 = vmatpush1.bf16.msra.mxu0 %v1212
        %1464 = vmatprep.subr.bf16.mxu0 %v1217
        %1465 = vmatpush1.bf16.msra.mxu0 %v1216
        %1466 = vmatprep.subr.bf16.mxu0 %v1221
        %1467 = vmatpush1.bf16.msra.mxu0 %v1220
        %1468 = vmatprep.subr.bf16.mxu0 %v1225
        %1469 = vmatpush1.bf16.msra.mxu0 %v1224
        %1470 = vmatprep.subr.bf16.mxu0 %v1229
        %1471 = vmatpush1.bf16.msra.mxu0 %v1228
        %1472 = vmatprep.subr.bf16.mxu0 %v1233
        %1473 = vmatpush1.bf16.msra.mxu0 %v1232
        %1474 = vmatprep.subr.bf16.mxu0 %v1237
        %1475 = vmatpush1.bf16.msra.mxu0 %v1236
        %1476 = vmatprep.subr.bf16.mxu0 %v1241
        %1477 = vmatpush1.bf16.msra.mxu0 %v1240
        %1478 = vmatprep.subr.bf16.mxu0 %v1245
        %1479 = vmatpush1.bf16.msra.mxu0 %v1244
        %1480 = vmatprep.subr.bf16.mxu0 %v1249
        %1481 = vmatpush1.bf16.msra.mxu0 %v1248
        %1482 = vmatprep.subr.bf16.mxu0 %v1253
        %1483 = vmatpush1.bf16.msra.mxu0 %v1252
        %1484 = vmatprep.subr.bf16.mxu0 %v1257
        %1485 = vmatpush1.bf16.msra.mxu0 %v1256
        %1486 = vmatprep.subr.bf16.mxu0 %v1261
        %1487 = vmatpush1.bf16.msra.mxu0 %v1260
        %1488 = vmatprep.mubr.bf16.mxu0 %v685
        %1489 = vmatmul.mubr.bf16.gmra.mrb[0].mxu0 %v684
        %v1490 = vpop.f32.mrb[0].mxu0
        %v1491 = vadd.f32 0.0, %v1490
        %v1492 = vpop.f32.mrb[0].mxu0
        %v1493 = vadd.f32 0.0, %v1492
        %v1494 = vpop.f32.mrb[0].mxu0
        %v1495 = vadd.f32 0.0, %v1494
        %v1496 = vpop.f32.mrb[0].mxu0
        %v1497 = vadd.f32 0.0, %v1496
        %1498 = vdwg.mxu0
        %1499 = vmatprep.subr.bf16.mxu0 %v1265
        %1500 = vmatpush1.bf16.msra.mxu0 %v1264
        %1501 = vmatprep.subr.bf16.mxu0 %v1269
        %1502 = vmatpush1.bf16.msra.mxu0 %v1268
        %1503 = vmatprep.subr.bf16.mxu0 %v1273
        %1504 = vmatpush1.bf16.msra.mxu0 %v1272
        %1505 = vmatprep.subr.bf16.mxu0 %v1277
        %1506 = vmatpush1.bf16.msra.mxu0 %v1276
        %1507 = vmatprep.subr.bf16.mxu0 %v1281
        %1508 = vmatpush1.bf16.msra.mxu0 %v1280
        %1509 = vmatprep.subr.bf16.mxu0 %v1285
        %1510 = vmatpush1.bf16.msra.mxu0 %v1284
        %1511 = vmatprep.subr.bf16.mxu0 %v1289
        %1512 = vmatpush1.bf16.msra.mxu0 %v1288
        %1513 = vmatprep.subr.bf16.mxu0 %v1293
        %1514 = vmatpush1.bf16.msra.mxu0 %v1292
        %1515 = vmatprep.subr.bf16.mxu0 %v1297
        %1516 = vmatpush1.bf16.msra.mxu0 %v1296
        %1517 = vmatprep.subr.bf16.mxu0 %v1301
        %1518 = vmatpush1.bf16.msra.mxu0 %v1300
        %1519 = vmatprep.subr.bf16.mxu0 %v1305
        %1520 = vmatpush1.bf16.msra.mxu0 %v1304
        %1521 = vmatprep.subr.bf16.mxu0 %v1309
        %1522 = vmatpush1.bf16.msra.mxu0 %v1308
        %1523 = vmatprep.subr.bf16.mxu0 %v1313
        %1524 = vmatpush1.bf16.msra.mxu0 %v1312
        %1525 = vmatprep.subr.bf16.mxu0 %v1317
        %1526 = vmatpush1.bf16.msra.mxu0 %v1316
        %1527 = vmatprep.subr.bf16.mxu0 %v1321
        %1528 = vmatpush1.bf16.msra.mxu0 %v1320
        %1529 = vmatprep.subr.bf16.mxu0 %v1325
        %1530 = vmatpush1.bf16.msra.mxu0 %v1324
        %1531 = vmatprep.mubr.bf16.mxu0 %v687
        %1532 = vmatmul.mubr.bf16.gmra.mrb[0].mxu0 %v686
        %v1533 = vpop.f32.mrb[0].mxu0
        %v1534 = vadd.f32 %v1491, %v1533
        %v1535 = vpop.f32.mrb[0].mxu0
        %v1536 = vadd.f32 %v1493, %v1535
        %v1537 = vpop.f32.mrb[0].mxu0
        %v1538 = vadd.f32 %v1495, %v1537
        %v1539 = vpop.f32.mrb[0].mxu0
        %v1540 = vadd.f32 %v1497, %v1539
        %1541 = vdwg.mxu0
        %1542 = vmatprep.subr.bf16.mxu0 %v1203
        %1543 = vmatpush1.bf16.msra.mxu0 %v1202
        %1544 = vmatprep.subr.bf16.mxu0 %v1207
        %1545 = vmatpush1.bf16.msra.mxu0 %v1206
        %1546 = vmatprep.subr.bf16.mxu0 %v1211
        %1547 = vmatpush1.bf16.msra.mxu0 %v1210
        %1548 = vmatprep.subr.bf16.mxu0 %v1215
        %1549 = vmatpush1.bf16.msra.mxu0 %v1214
        %1550 = vmatprep.subr.bf16.mxu0 %v1219
        %1551 = vmatpush1.bf16.msra.mxu0 %v1218
        %1552 = vmatprep.subr.bf16.mxu0 %v1223
        %1553 = vmatpush1.bf16.msra.mxu0 %v1222
        %1554 = vmatprep.subr.bf16.mxu0 %v1227
        %1555 = vmatpush1.bf16.msra.mxu0 %v1226
        %1556 = vmatprep.subr.bf16.mxu0 %v1231
        %1557 = vmatpush1.bf16.msra.mxu0 %v1230
        %1558 = vmatprep.subr.bf16.mxu0 %v1235
        %1559 = vmatpush1.bf16.msra.mxu0 %v1234
        %1560 = vmatprep.subr.bf16.mxu0 %v1239
        %1561 = vmatpush1.bf16.msra.mxu0 %v1238
        %1562 = vmatprep.subr.bf16.mxu0 %v1243
        %1563 = vmatpush1.bf16.msra.mxu0 %v1242
        %1564 = vmatprep.subr.bf16.mxu0 %v1247
        %1565 = vmatpush1.bf16.msra.mxu0 %v1246
        %1566 = vmatprep.subr.bf16.mxu0 %v1251
        %1567 = vmatpush1.bf16.msra.mxu0 %v1250
        %1568 = vmatprep.subr.bf16.mxu0 %v1255
        %1569 = vmatpush1.bf16.msra.mxu0 %v1254
        %1570 = vmatprep.subr.bf16.mxu0 %v1259
        %1571 = vmatpush1.bf16.msra.mxu0 %v1258
        %1572 = vmatprep.subr.bf16.mxu0 %v1263
        %1573 = vmatpush1.bf16.msra.mxu0 %v1262
        %1574 = vmatprep.mubr.bf16.mxu0 %v685
        %1575 = vmatmul.mubr.bf16.gmra.mrb[0].mxu0 %v684
        %v1576 = vpop.f32.mrb[0].mxu0
        %v1577 = vadd.f32 0.0, %v1576
        %v1578 = vpop.f32.mrb[0].mxu0
        %v1579 = vadd.f32 0.0, %v1578
        %v1580 = vpop.f32.mrb[0].mxu0
        %v1581 = vadd.f32 0.0, %v1580
        %v1582 = vpop.f32.mrb[0].mxu0
        %v1583 = vadd.f32 0.0, %v1582
        %1584 = vdwg.mxu0
        %1585 = vmatprep.subr.bf16.mxu0 %v1267
        %1586 = vmatpush1.bf16.msra.mxu0 %v1266
        %1587 = vmatprep.subr.bf16.mxu0 %v1271
        %1588 = vmatpush1.bf16.msra.mxu0 %v1270
        %1589 = vmatprep.subr.bf16.mxu0 %v1275
        %1590 = vmatpush1.bf16.msra.mxu0 %v1274
        %1591 = vmatprep.subr.bf16.mxu0 %v1279
        %1592 = vmatpush1.bf16.msra.mxu0 %v1278
        %1593 = vmatprep.subr.bf16.mxu0 %v1283
        %1594 = vmatpush1.bf16.msra.mxu0 %v1282
        %1595 = vmatprep.subr.bf16.mxu0 %v1287
        %1596 = vmatpush1.bf16.msra.mxu0 %v1286
        %1597 = vmatprep.subr.bf16.mxu0 %v1291
        %1598 = vmatpush1.bf16.msra.mxu0 %v1290
        %1599 = vmatprep.subr.bf16.mxu0 %v1295
        %1600 = vmatpush1.bf16.msra.mxu0 %v1294
        %1601 = vmatprep.subr.bf16.mxu0 %v1299
        %1602 = vmatpush1.bf16.msra.mxu0 %v1298
        %1603 = vmatprep.subr.bf16.mxu0 %v1303
        %1604 = vmatpush1.bf16.msra.mxu0 %v1302
        %1605 = vmatprep.subr.bf16.mxu0 %v1307
        %1606 = vmatpush1.bf16.msra.mxu0 %v1306
        %1607 = vmatprep.subr.bf16.mxu0 %v1311
        %1608 = vmatpush1.bf16.msra.mxu0 %v1310
        %1609 = vmatprep.subr.bf16.mxu0 %v1315
        %1610 = vmatpush1.bf16.msra.mxu0 %v1314
        %1611 = vmatprep.subr.bf16.mxu0 %v1319
        %1612 = vmatpush1.bf16.msra.mxu0 %v1318
        %1613 = vmatprep.subr.bf16.mxu0 %v1323
        %1614 = vmatpush1.bf16.msra.mxu0 %v1322
        %1615 = vmatprep.subr.bf16.mxu0 %v1327
        %1616 = vmatpush1.bf16.msra.mxu0 %v1326
        %1617 = vmatprep.mubr.bf16.mxu0 %v687
        %1618 = vmatmul.mubr.bf16.gmra.mrb[0].mxu0 %v686
        %v1619 = vpop.f32.mrb[0].mxu0
        %v1620 = vadd.f32 %v1577, %v1619
        %v1621 = vpop.f32.mrb[0].mxu0
        %v1622 = vadd.f32 %v1579, %v1621
        %v1623 = vpop.f32.mrb[0].mxu0
        %v1624 = vadd.f32 %v1581, %v1623
        %v1625 = vpop.f32.mrb[0].mxu0
        %v1626 = vadd.f32 %v1583, %v1625
        %1627 = vdwg.mxu0
        %v1628 = vpack.c.bf16 %v1538, %v1534
        %v1629 = vpack.c.bf16 %v1540, %v1536
        %v1630 = vpack.c.bf16 %v1624, %v1620
        %v1631 = vpack.c.bf16 %v1626, %v1622
        %v1632 = vld [vmem:[%s413] sm:$0xf]
        %v1634 = vlaneseq
        %v1635 = vshrl.u32 %v1634, 7
        %v1636 = vsub.s32 0, %v1635
        %v1637 = vrot.slane %v1632, %v1636
        %v1638 = vlaneseq
        %v1639 = vshrl.u32 %v1638, 7
        %v1640 = vsub.s32 1, %v1639
        %v1641 = vrot.slane %v1632, %v1640
        %v1642 = vlaneseq
        %v1643 = vshrl.u32 %v1642, 7
        %v1644 = vsub.s32 2, %v1643
        %v1645 = vrot.slane %v1632, %v1644
        %v1646 = vlaneseq
        %v1647 = vshrl.u32 %v1646, 7
        %v1648 = vsub.s32 3, %v1647
        %v1649 = vrot.slane %v1632, %v1648
        %v1654 = vpack.c.bf16 %v1637, %v1637
        %v1655 = vpack.c.bf16 %v1641, %v1641
        %v1656 = vpack.c.bf16 %v1645, %v1645
        %v1657 = vpack.c.bf16 %v1649, %v1649
        %v1659 = vpack.i.b16 %v1654, %v1654
        %v1661 = vlaneseq
        %v1662 = vshrl.u32 %v1661, 7
        %v1663 = vsub.s32 0, %v1662
        %v1664 = vrot.slane %v1659, %v1663
        %v1666 = vpack.i.b16 %v1655, %v1655
        %v1668 = vlaneseq
        %v1669 = vshrl.u32 %v1668, 7
        %v1670 = vsub.s32 0, %v1669
        %v1671 = vrot.slane %v1666, %v1670
        %v1673 = vpack.i.b16 %v1656, %v1656
        %v1675 = vlaneseq
        %v1676 = vshrl.u32 %v1675, 7
        %v1677 = vsub.s32 0, %v1676
        %v1678 = vrot.slane %v1673, %v1677
        %v1680 = vpack.i.b16 %v1657, %v1657
        %v1682 = vlaneseq
        %v1683 = vshrl.u32 %v1682, 7
        %v1684 = vsub.s32 0, %v1683
        %v1685 = vrot.slane %v1680, %v1684
        %v1686 = vadd.bf16 %v1628, %v1664
        %v1687 = vadd.bf16 %v1629, %v1671
        %v1688 = vadd.bf16 %v1630, %v1678
        %v1689 = vadd.bf16 %v1631, %v1685
        %v1690 = vtanh.bf16.pop %v1686
        %v1691 = vtanh.bf16.pop %v1687
        %v1692 = vtanh.bf16.pop %v1688
        %v1693 = vtanh.bf16.pop %v1689
        %v1694 = vld [vmem:[%s418] sm:$0xf]
        %v1695 = vld [vmem:[%s418 + $0x4] sm:$0xf]
        %v1696 = vld [vmem:[%s418 + $0x8] sm:$0xf]
        %v1697 = vld [vmem:[%s418 + $0xc] sm:$0xf]
        %v1698 = vld [vmem:[%s418 + $0x10] sm:$0xf]
        %v1699 = vld [vmem:[%s418 + $0x14] sm:$0xf]
        %v1700 = vld [vmem:[%s418 + $0x18] sm:$0xf]
        %v1701 = vld [vmem:[%s418 + $0x1c] sm:$0xf]
        %v1702 = vld [vmem:[%s418 + $0x20] sm:$0xf]
        %v1703 = vld [vmem:[%s418 + $0x24] sm:$0xf]
        %v1704 = vld [vmem:[%s418 + $0x28] sm:$0xf]
        %v1705 = vld [vmem:[%s418 + $0x2c] sm:$0xf]
        %v1706 = vld [vmem:[%s418 + $0x30] sm:$0xf]
        %v1707 = vld [vmem:[%s418 + $0x34] sm:$0xf]
        %v1708 = vld [vmem:[%s418 + $0x38] sm:$0xf]
        %v1709 = vld [vmem:[%s418 + $0x3c] sm:$0xf]
        %v1710 = vld [vmem:[%s418 + $0x40] sm:$0xf]
        %v1711 = vld [vmem:[%s418 + $0x44] sm:$0xf]
        %v1712 = vld [vmem:[%s418 + $0x48] sm:$0xf]
        %v1713 = vld [vmem:[%s418 + $0x4c] sm:$0xf]
        %v1714 = vld [vmem:[%s418 + $0x50] sm:$0xf]
        %v1715 = vld [vmem:[%s418 + $0x54] sm:$0xf]
        %v1716 = vld [vmem:[%s418 + $0x58] sm:$0xf]
        %v1717 = vld [vmem:[%s418 + $0x5c] sm:$0xf]
        %v1718 = vld [vmem:[%s418 + $0x60] sm:$0xf]
        %v1719 = vld [vmem:[%s418 + $0x64] sm:$0xf]
        %v1720 = vld [vmem:[%s418 + $0x68] sm:$0xf]
        %v1721 = vld [vmem:[%s418 + $0x6c] sm:$0xf]
        %v1722 = vld [vmem:[%s418 + $0x70] sm:$0xf]
        %v1723 = vld [vmem:[%s418 + $0x74] sm:$0xf]
        %v1724 = vld [vmem:[%s418 + $0x78] sm:$0xf]
        %v1725 = vld [vmem:[%s418 + $0x7c] sm:$0xf]
        %v1726 = vld [vmem:[%s418 + $0x80] sm:$0xf]
        %v1727 = vld [vmem:[%s418 + $0x84] sm:$0xf]
        %v1728 = vld [vmem:[%s418 + $0x88] sm:$0xf]
        %v1729 = vld [vmem:[%s418 + $0x8c] sm:$0xf]
        %v1730 = vld [vmem:[%s418 + $0x90] sm:$0xf]
        %v1731 = vld [vmem:[%s418 + $0x94] sm:$0xf]
        %v1732 = vld [vmem:[%s418 + $0x98] sm:$0xf]
        %v1733 = vld [vmem:[%s418 + $0x9c] sm:$0xf]
        %v1734 = vld [vmem:[%s418 + $0xa0] sm:$0xf]
        %v1735 = vld [vmem:[%s418 + $0xa4] sm:$0xf]
        %v1736 = vld [vmem:[%s418 + $0xa8] sm:$0xf]
        %v1737 = vld [vmem:[%s418 + $0xac] sm:$0xf]
        %v1738 = vld [vmem:[%s418 + $0xb0] sm:$0xf]
        %v1739 = vld [vmem:[%s418 + $0xb4] sm:$0xf]
        %v1740 = vld [vmem:[%s418 + $0xb8] sm:$0xf]
        %v1741 = vld [vmem:[%s418 + $0xbc] sm:$0xf]
        %v1742 = vld [vmem:[%s418 + $0xc0] sm:$0xf]
        %v1743 = vld [vmem:[%s418 + $0xc4] sm:$0xf]
        %v1744 = vld [vmem:[%s418 + $0xc8] sm:$0xf]
        %v1745 = vld [vmem:[%s418 + $0xcc] sm:$0xf]
        %v1746 = vld [vmem:[%s418 + $0xd0] sm:$0xf]
        %v1747 = vld [vmem:[%s418 + $0xd4] sm:$0xf]
        %v1748 = vld [vmem:[%s418 + $0xd8] sm:$0xf]
        %v1749 = vld [vmem:[%s418 + $0xdc] sm:$0xf]
        %v1750 = vld [vmem:[%s418 + $0xe0] sm:$0xf]
        %v1751 = vld [vmem:[%s418 + $0xe4] sm:$0xf]
        %v1752 = vld [vmem:[%s418 + $0xe8] sm:$0xf]
        %v1753 = vld [vmem:[%s418 + $0xec] sm:$0xf]
        %v1754 = vld [vmem:[%s418 + $0xf0] sm:$0xf]
        %v1755 = vld [vmem:[%s418 + $0xf4] sm:$0xf]
        %v1756 = vld [vmem:[%s418 + $0xf8] sm:$0xf]
        %v1757 = vld [vmem:[%s418 + $0xfc] sm:$0xf]
        %v1758 = vld [vmem:[%s421] sm:$0x1]
        %v1760 = vlaneseq
        %v1761 = vshrl.u32 %v1760, 7
        %v1762 = vsub.s32 0, %v1761
        %v1763 = vrot.slane %v1758, %v1762
        %v1829 = vunpack.c.l.b16 %v1694
        %v1830 = vunpack.c.l.b16 %v1695
        %v1831 = vunpack.c.l.b16 %v1696
        %v1832 = vunpack.c.l.b16 %v1697
        %v1833 = vunpack.c.l.b16 %v1698
        %v1834 = vunpack.c.l.b16 %v1699
        %v1835 = vunpack.c.l.b16 %v1700
        %v1836 = vunpack.c.l.b16 %v1701
        %v1837 = vunpack.c.l.b16 %v1702
        %v1838 = vunpack.c.l.b16 %v1703
        %v1839 = vunpack.c.l.b16 %v1704
        %v1840 = vunpack.c.l.b16 %v1705
        %v1841 = vunpack.c.l.b16 %v1706
        %v1842 = vunpack.c.l.b16 %v1707
        %v1843 = vunpack.c.l.b16 %v1708
        %v1844 = vunpack.c.l.b16 %v1709
        %v1845 = vunpack.c.l.b16 %v1710
        %v1846 = vunpack.c.l.b16 %v1711
        %v1847 = vunpack.c.l.b16 %v1712
        %v1848 = vunpack.c.l.b16 %v1713
        %v1849 = vunpack.c.l.b16 %v1714
        %v1850 = vunpack.c.l.b16 %v1715
        %v1851 = vunpack.c.l.b16 %v1716
        %v1852 = vunpack.c.l.b16 %v1717
        %v1853 = vunpack.c.l.b16 %v1718
        %v1854 = vunpack.c.l.b16 %v1719
        %v1855 = vunpack.c.l.b16 %v1720
        %v1856 = vunpack.c.l.b16 %v1721
        %v1857 = vunpack.c.l.b16 %v1722
        %v1858 = vunpack.c.l.b16 %v1723
        %v1859 = vunpack.c.l.b16 %v1724
        %v1860 = vunpack.c.l.b16 %v1725
        %v1861 = vunpack.c.l.b16 %v1726
        %v1862 = vunpack.c.l.b16 %v1727
        %v1863 = vunpack.c.l.b16 %v1728
        %v1864 = vunpack.c.l.b16 %v1729
        %v1865 = vunpack.c.l.b16 %v1730
        %v1866 = vunpack.c.l.b16 %v1731
        %v1867 = vunpack.c.l.b16 %v1732
        %v1868 = vunpack.c.l.b16 %v1733
        %v1869 = vunpack.c.l.b16 %v1734
        %v1870 = vunpack.c.l.b16 %v1735
        %v1871 = vunpack.c.l.b16 %v1736
        %v1872 = vunpack.c.l.b16 %v1737
        %v1873 = vunpack.c.l.b16 %v1738
        %v1874 = vunpack.c.l.b16 %v1739
        %v1875 = vunpack.c.l.b16 %v1740
        %v1876 = vunpack.c.l.b16 %v1741
        %v1877 = vunpack.c.l.b16 %v1742
        %v1878 = vunpack.c.l.b16 %v1743
        %v1879 = vunpack.c.l.b16 %v1744
        %v1880 = vunpack.c.l.b16 %v1745
        %v1881 = vunpack.c.l.b16 %v1746
        %v1882 = vunpack.c.l.b16 %v1747
        %v1883 = vunpack.c.l.b16 %v1748
        %v1884 = vunpack.c.l.b16 %v1749
        %v1885 = vunpack.c.l.b16 %v1750
        %v1886 = vunpack.c.l.b16 %v1751
        %v1887 = vunpack.c.l.b16 %v1752
        %v1888 = vunpack.c.l.b16 %v1753
        %v1889 = vunpack.c.l.b16 %v1754
        %v1890 = vunpack.c.l.b16 %v1755
        %v1891 = vunpack.c.l.b16 %v1756
        %v1892 = vunpack.c.l.b16 %v1757
        %v1893 = vpack.c.b16 %v1830, %v1829
        %v1894 = vpack.c.b16 %v1832, %v1831
        %v1895 = vpack.c.b16 %v1834, %v1833
        %v1896 = vpack.c.b16 %v1836, %v1835
        %v1897 = vpack.c.b16 %v1838, %v1837
        %v1898 = vpack.c.b16 %v1840, %v1839
        %v1899 = vpack.c.b16 %v1842, %v1841
        %v1900 = vpack.c.b16 %v1844, %v1843
        %v1901 = vpack.c.b16 %v1846, %v1845
        %v1902 = vpack.c.b16 %v1848, %v1847
        %v1903 = vpack.c.b16 %v1850, %v1849
        %v1904 = vpack.c.b16 %v1852, %v1851
        %v1905 = vpack.c.b16 %v1854, %v1853
        %v1906 = vpack.c.b16 %v1856, %v1855
        %v1907 = vpack.c.b16 %v1858, %v1857
        %v1908 = vpack.c.b16 %v1860, %v1859
        %v1909 = vpack.c.b16 %v1862, %v1861
        %v1910 = vpack.c.b16 %v1864, %v1863
        %v1911 = vpack.c.b16 %v1866, %v1865
        %v1912 = vpack.c.b16 %v1868, %v1867
        %v1913 = vpack.c.b16 %v1870, %v1869
        %v1914 = vpack.c.b16 %v1872, %v1871
        %v1915 = vpack.c.b16 %v1874, %v1873
        %v1916 = vpack.c.b16 %v1876, %v1875
        %v1917 = vpack.c.b16 %v1878, %v1877
        %v1918 = vpack.c.b16 %v1880, %v1879
        %v1919 = vpack.c.b16 %v1882, %v1881
        %v1920 = vpack.c.b16 %v1884, %v1883
        %v1921 = vpack.c.b16 %v1886, %v1885
        %v1922 = vpack.c.b16 %v1888, %v1887
        %v1923 = vpack.c.b16 %v1890, %v1889
        %v1924 = vpack.c.b16 %v1892, %v1891
        %1957 = vmatprep.subr.bf16.mxu0 0
        %1958 = vmatpush1.bf16.msra.mxu0 %v1893
        %1959 = vmatprep.subr.bf16.mxu0 0
        %1960 = vmatpush1.bf16.msra.mxu0 %v1894
        %1961 = vmatprep.subr.bf16.mxu0 0
        %1962 = vmatpush1.bf16.msra.mxu0 %v1895
        %1963 = vmatprep.subr.bf16.mxu0 0
        %1964 = vmatpush1.bf16.msra.mxu0 %v1896
        %1965 = vmatprep.subr.bf16.mxu0 0
        %1966 = vmatpush1.bf16.msra.mxu0 %v1897
        %1967 = vmatprep.subr.bf16.mxu0 0
        %1968 = vmatpush1.bf16.msra.mxu0 %v1898
        %1969 = vmatprep.subr.bf16.mxu0 0
        %1970 = vmatpush1.bf16.msra.mxu0 %v1899
        %1971 = vmatprep.subr.bf16.mxu0 0
        %1972 = vmatpush1.bf16.msra.mxu0 %v1900
        %1973 = vmatprep.subr.bf16.mxu0 0
        %1974 = vmatpush1.bf16.msra.mxu0 %v1901
        %1975 = vmatprep.subr.bf16.mxu0 0
        %1976 = vmatpush1.bf16.msra.mxu0 %v1902
        %1977 = vmatprep.subr.bf16.mxu0 0
        %1978 = vmatpush1.bf16.msra.mxu0 %v1903
        %1979 = vmatprep.subr.bf16.mxu0 0
        %1980 = vmatpush1.bf16.msra.mxu0 %v1904
        %1981 = vmatprep.subr.bf16.mxu0 0
        %1982 = vmatpush1.bf16.msra.mxu0 %v1905
        %1983 = vmatprep.subr.bf16.mxu0 0
        %1984 = vmatpush1.bf16.msra.mxu0 %v1906
        %1985 = vmatprep.subr.bf16.mxu0 0
        %1986 = vmatpush1.bf16.msra.mxu0 %v1907
        %1987 = vmatprep.subr.bf16.mxu0 0
        %1988 = vmatpush1.bf16.msra.mxu0 %v1908
        %1989 = vmatprep.mubr.bf16.mxu0 %v1691
        %1990 = vmatmul.mubr.bf16.gmra.mrb[0].mxu0 %v1690
        %v1991 = vpop.f32.mrb[0].mxu0
        %v1992 = vadd.f32 %v1763, %v1991
        %v1993 = vpop.f32.mrb[0].mxu0
        %v1994 = vpop.f32.mrb[0].mxu0
        %v1995 = vadd.f32 %v1763, %v1994
        %v1996 = vpop.f32.mrb[0].mxu0
        %1997 = vdwg.mxu0
        %1998 = vmatprep.subr.bf16.mxu0 0
        %1999 = vmatpush1.bf16.msra.mxu0 %v1909
        %2000 = vmatprep.subr.bf16.mxu0 0
        %2001 = vmatpush1.bf16.msra.mxu0 %v1910
        %2002 = vmatprep.subr.bf16.mxu0 0
        %2003 = vmatpush1.bf16.msra.mxu0 %v1911
        %2004 = vmatprep.subr.bf16.mxu0 0
        %2005 = vmatpush1.bf16.msra.mxu0 %v1912
        %2006 = vmatprep.subr.bf16.mxu0 0
        %2007 = vmatpush1.bf16.msra.mxu0 %v1913
        %2008 = vmatprep.subr.bf16.mxu0 0
        %2009 = vmatpush1.bf16.msra.mxu0 %v1914
        %2010 = vmatprep.subr.bf16.mxu0 0
        %2011 = vmatpush1.bf16.msra.mxu0 %v1915
        %2012 = vmatprep.subr.bf16.mxu0 0
        %2013 = vmatpush1.bf16.msra.mxu0 %v1916
        %2014 = vmatprep.subr.bf16.mxu0 0
        %2015 = vmatpush1.bf16.msra.mxu0 %v1917
        %2016 = vmatprep.subr.bf16.mxu0 0
        %2017 = vmatpush1.bf16.msra.mxu0 %v1918
        %2018 = vmatprep.subr.bf16.mxu0 0
        %2019 = vmatpush1.bf16.msra.mxu0 %v1919
        %2020 = vmatprep.subr.bf16.mxu0 0
        %2021 = vmatpush1.bf16.msra.mxu0 %v1920
        %2022 = vmatprep.subr.bf16.mxu0 0
        %2023 = vmatpush1.bf16.msra.mxu0 %v1921
        %2024 = vmatprep.subr.bf16.mxu0 0
        %2025 = vmatpush1.bf16.msra.mxu0 %v1922
        %2026 = vmatprep.subr.bf16.mxu0 0
        %2027 = vmatpush1.bf16.msra.mxu0 %v1923
        %2028 = vmatprep.subr.bf16.mxu0 0
        %2029 = vmatpush1.bf16.msra.mxu0 %v1924
        %2030 = vmatprep.mubr.bf16.mxu0 %v1693
        %2031 = vmatmul.mubr.bf16.gmra.mrb[0].mxu0 %v1692
        %v2032 = vpop.f32.mrb[0].mxu0
        %v2033 = vadd.f32 %v1992, %v2032
        %v2034 = vpop.f32.mrb[0].mxu0
        %v2035 = vpop.f32.mrb[0].mxu0
        %v2036 = vadd.f32 %v1995, %v2035
        %v2037 = vpop.f32.mrb[0].mxu0
        %2038 = vdwg.mxu0
        %vm2039 = vcmask 64512
        %2040 = vst.msk [vmem:[%s430] sm:$0xff] %vm2039, %v2033
        %2041 = vst.msk [vmem:[%s430 + $0x8] sm:$0xff] %vm2039, %v2036
        %s2042 = smul.u32 2, %s26
        %p2043 = scmp.lt.s32.totalorder %s25, 1
        %s2044 = scalar_select %p2043, %s25, 1
        %p2045 = scmp.lt.s32.totalorder %s2042, 1
        %s2046 = scalar_select %p2045, %s2042, 1
        %s2047 = smul.addr %s2044, 2
        %s2048 = sadd.s32 %s2046, %s2047
        %s2049 = smul.addr %s2048, 8
        %s2050 = scalar_lea.vmem %s7, %s2049
        // Predicated region
        $region53: #{forward.1} parent=47 // pred_check
          %p2051 = pneg %p235
        $region54: #{forward.1} parent=47 // pred_check_branch
          %2053 = sbr.rel (%p2051) target = $region56
        $region55: #{forward.1} parent=47 // pred_region
          %s2054 = smul.u32 2, %s26
        $region56: #{forward.1} parent=47 // pred_fallthru
          _
      $region48: #{forward.1} parent=5 // pred_fallthru
        _
      %p2055 = scmp.le.s32.totalorder 2, %s16
      // Predicated region
      $region57: #{forward.1} parent=5 // pred_check
        %p2056 = pneg %p2055
      $region58: #{forward.1} parent=5 // pred_check_branch
        %2058 = sbr.rel (%p2056) target = $region60
      $region59: #{forward.1} parent=5 // pred_region
        %s2059 = ssub.s32 %s16, 2
        // Predicated region
        $region61: #{forward.1} parent=59 // pred_check
          %p2060 = pneg %p241
        $region62: #{forward.1} parent=59 // pred_check_branch
          %2062 = sbr.rel (%p2060) target = $region64
        $region63: #{forward.1} parent=59 // pred_region
          %s2063 = smul.u32 2, %s28
          %p2064 = scmp.lt.s32.totalorder %s27, 1
          %s2065 = scalar_select %p2064, %s27, 1
          %p2066 = scmp.lt.s32.totalorder %s2063, 1
          %s2067 = scalar_select %p2066, %s2063, 1
          %s2068 = smul.addr %s2065, 2
          %s2069 = sadd.s32 %s2067, %s2068
          %s2070 = smul.addr %s2069, 8
          %s2071 = scalar_lea.vmem %s7, %s2070
        $region64: #{forward.1} parent=59 // pred_fallthru
          _
      $region60: #{forward.1} parent=5 // pred_fallthru
        _
    $region6: #{forward.1} parent=1 // loop_footer
      %s20 = sadd.s32 1, %s16
    $region7: #{forward.1} parent=1 // loop_footer_branch
      %15 = sbr.rel target = $region3
    $region8: #{forward.1} parent=1 // loop_exit
      _
    %2072 = vsyncpa [#allocation3], 1
    %s2073 = scalar_lea.sflag [#allocation3], 1
    %2074 = vsyncpa %s2073, 1

</llo_original>
